<compile_context>
chip_gen: v5e
topology: v5e:2x2
jax: 0.10.0
libtpu: 0.0.40
codegen_flags: <defaults>
</compile_context>

<pallas_src>
import jax
import jax.numpy as jnp
from jax.experimental import pallas as pl
from jax.experimental.pallas import tpu as pltpu


def _bigru_kernel(x_ref, wih_ref, whh_ref, bih_ref, bhh_ref, out_ref, hlast_ref):
    """Fused bidirectional GRU over the whole sequence in one invocation.

    x_ref    : (B, T, D)    input, native batch-first layout
    wih_ref  : (D, 6H)      [Wih_fwd | Wih_bwd], gate order [r, z, n] each
    whh_ref  : (2H, 6H)     block-diagonal [Whh_fwd 0; 0 Whh_bwd]
    bih_ref  : (1, 6H)
    bhh_ref  : (1, 6H)
    out_ref  : (B, T, 2H)   [:, :, :H] forward outputs, [:, :, H:] backward
    hlast_ref: (B, 2H)      bridged last hidden ([h_fwd_last | h_bwd_last])
    """
    B, T, D = x_ref.shape
    H = hlast_ref.shape[-1] // 2       # per-direction hidden size
    G = 3 * H                          # gate width per direction

    # ---- hoisted input projection: all timesteps, both directions ----------
    x_flat = x_ref[...].reshape(B * T, D)                            # (B*T, D)
    gi_all = jnp.dot(x_flat, wih_ref[...],
                     preferred_element_type=jnp.float32) + bih_ref[...]
    gi_all = gi_all.reshape(B, T, 2 * G)                             # (B, T, 6H)

    whh = whh_ref[...]                                               # (2H, 6H)
    bhh = bhh_ref[...]                                               # (1, 6H)

    def gru_update(gi, gh, h_prev):
        # gi, gh: (B, 3H) with gate order [r, z, n]; h_prev: (B, H)
        r = jax.nn.sigmoid(gi[:, :H] + gh[:, :H])
        z = jax.nn.sigmoid(gi[:, H:2 * H] + gh[:, H:2 * H])
        n = jnp.tanh(gi[:, 2 * H:] + r * gh[:, 2 * H:])
        return (1.0 - z) * n + z * h_prev

    # hidden state for both directions: [h_fwd | h_bwd], (B, 2H)
    h = jnp.zeros((B, 2 * H), jnp.float32)

    # T is static & small -> fully unrolled serial recurrence, concrete indices.
    for s in range(T):
        # single fused hidden->hidden matmul for both directions
        gh = jnp.dot(h, whh, preferred_element_type=jnp.float32) + bhh  # (B, 6H)
        h_f = gru_update(gi_all[:, s, :G], gh[:, :G], h[:, :H])
        h_b = gru_update(gi_all[:, T - 1 - s, G:], gh[:, G:], h[:, H:])
        h = jnp.concatenate([h_f, h_b], axis=-1)

        out_ref[:, s, :H] = h_f.astype(out_ref.dtype)          # fwd output at t=s
        out_ref[:, T - 1 - s, H:] = h_b.astype(out_ref.dtype)  # bwd output at t=T-1-s

    # h == [h_fwd_last | h_bwd_last] == _bridge_bidirectional_hidden result.
    hlast_ref[...] = h.astype(hlast_ref.dtype)


def _pack_params(params):
    """Pack torch-layout GRU params into fused kernel weights."""
    H = params["w_hh_f"].shape[1]
    # input->hidden: (D, 6H) = [fwd r,z,n | bwd r,z,n]
    wih = jnp.concatenate([params["w_ih_f"].T, params["w_ih_b"].T], axis=1)
    # hidden->hidden: block-diagonal (2H, 6H) so one matmul serves both dirs
    whh = jnp.zeros((2 * H, 6 * H), jnp.float32)
    whh = whh.at[:H, :3 * H].set(params["w_hh_f"].T)
    whh = whh.at[H:, 3 * H:].set(params["w_hh_b"].T)
    bih = jnp.concatenate([params["b_ih_f"], params["b_ih_b"]])[None]   # (1, 6H)
    bhh = jnp.concatenate([params["b_hh_f"], params["b_hh_b"]])[None]   # (1, 6H)
    return wih, whh, bih, bhh


@jax.jit
def gru_encoder_forward(x, params):
    """GRUEncoder.forward (bidirectional, 1 layer, no lengths, no embedder).

    x: (B, T, D) float32.
    Returns (outputs (B, T, 2H), last_hidden (1, B, 2H)).
    """
    B, T, D = x.shape
    H = params["w_hh_f"].shape[1]
    wih, whh, bih, bhh = _pack_params(params)

    vmem = pl.BlockSpec(memory_space=pltpu.MemorySpace.VMEM)
    out, h_last = pl.pallas_call(
        _bigru_kernel,
        out_shape=(jax.ShapeDtypeStruct((B, T, 2 * H), jnp.float32),
                   jax.ShapeDtypeStruct((B, 2 * H), jnp.float32)),
        in_specs=[vmem] * 5,
        out_specs=(vmem, vmem),
    )(x, wih, whh, bih, bhh)
    return out, h_last[None]


# ------------------------- pure-JAX reference ------------------------------
def _gru_direction_ref(x_tbd, w_ih, w_hh, b_ih, b_hh):
    H = w_hh.shape[1]
    B = x_tbd.shape[1]

    def step(h, x_t):
        gi = x_t @ w_ih.T + b_ih
        gh = h @ w_hh.T + b_hh
        r = jax.nn.sigmoid(gi[:, :H] + gh[:, :H])
        z = jax.nn.sigmoid(gi[:, H:2 * H] + gh[:, H:2 * H])
        n = jnp.tanh(gi[:, 2 * H:] + r * gh[:, 2 * H:])
        h_new = (1.0 - z) * n + z * h
        return h_new, h_new

    h0 = jnp.zeros((B, H), jnp.float32)
    h_last, out = jax.lax.scan(step, h0, x_tbd)
    return out, h_last


def gru_encoder_forward_ref(x, params):
    x_tbd = jnp.transpose(x, (1, 0, 2))
    out_f, h_f = _gru_direction_ref(
        x_tbd, params["w_ih_f"], params["w_hh_f"],
        params["b_ih_f"], params["b_hh_f"])
    out_b_rev, h_b = _gru_direction_ref(
        x_tbd[::-1], params["w_ih_b"], params["w_hh_b"],
        params["b_ih_b"], params["b_hh_b"])
    out_b = out_b_rev[::-1]
    outputs = jnp.transpose(jnp.concatenate([out_f, out_b], axis=-1), (1, 0, 2))
    last_hidden = jnp.concatenate([h_f, h_b], axis=-1)[None]
    return outputs, last_hidden


# ------------------------------ main ----------------------------------------
if __name__ == "__main__":
    # Module config: input_size=16, hidden_size=32, bidirectional=True,
    # num_layers=1 -> rnn_hidden_size H = hidden_size // 2 = 16.
    B, T, D = 2, 8, 16
    hidden_size = 32
    H = hidden_size // 2

    key = jax.random.PRNGKey(0)
    ks = jax.random.split(key, 9)
    bound = 1.0 / jnp.sqrt(H)  # PyTorch default GRU init: U(-1/sqrt(H), 1/sqrt(H))

    def u(k, shape):
        return jax.random.uniform(k, shape, jnp.float32, -bound, bound)

    params = {
        "w_ih_f": u(ks[0], (3 * H, D)),
        "w_hh_f": u(ks[1], (3 * H, H)),
        "b_ih_f": u(ks[2], (3 * H,)),
        "b_hh_f": u(ks[3], (3 * H,)),
        "w_ih_b": u(ks[4], (3 * H, D)),
        "w_hh_b": u(ks[5], (3 * H, H)),
        "b_ih_b": u(ks[6], (3 * H,)),
        "b_hh_b": u(ks[7], (3 * H,)),
    }

    x = jax.random.normal(ks[8], (B, T, D), jnp.float32)

    outputs, last_hidden = gru_encoder_forward(x, params)
    outputs = jax.block_until_ready(outputs)
    last_hidden = jax.block_until_ready(last_hidden)

    assert outputs.shape == (B, T, 2 * H)
    assert last_hidden.shape == (1, B, 2 * H)

    # correctness check against pure-JAX reference
    out_ref, hid_ref = gru_encoder_forward_ref(x, params)
    assert jnp.allclose(outputs, out_ref, rtol=1e-3, atol=1e-4), "outputs mismatch"
    assert jnp.allclose(last_hidden, hid_ref, rtol=1e-3, atol=1e-4), "hidden mismatch"

    print("KERNEL_OK")
</pallas_src>

<mosaic_0001>
module attributes {stable_mosaic.version = 11 : i64} {
  func.func @_bigru_kernel(%arg0: memref<2x8x16xf32, #tpu.memory_space<vmem>>, %arg1: memref<16x96xf32, #tpu.memory_space<vmem>>, %arg2: memref<32x96xf32, #tpu.memory_space<vmem>>, %arg3: memref<1x96xf32, #tpu.memory_space<vmem>>, %arg4: memref<1x96xf32, #tpu.memory_space<vmem>>, %arg5: memref<2x8x32xf32, #tpu.memory_space<vmem>>, %arg6: memref<2x32xf32, #tpu.memory_space<vmem>>) attributes {dimension_semantics = [], scalar_prefetch = 0 : i64, scratch_operands = 0 : i64, tpu.core_type = #tpu.core_type<tc>} {
    %c0 = arith.constant 0 : index
    %c0_0 = arith.constant 0 : index
    %c0_1 = arith.constant 0 : index
    %0 = vector.load %arg0[%c0, %c0_0, %c0_1] : memref<2x8x16xf32, #tpu.memory_space<vmem>>, vector<2x8x16xf32>
    %1 = vector.shape_cast %0 : vector<2x8x16xf32> to vector<16x16xf32>
    %c0_2 = arith.constant 0 : index
    %c0_3 = arith.constant 0 : index
    %2 = vector.load %arg1[%c0_2, %c0_3] : memref<16x96xf32, #tpu.memory_space<vmem>>, vector<16x96xf32>
    %cst = arith.constant dense<0.000000e+00> : vector<16x96xf32>
    %3 = tpu.matmul %1, %2, %cst {dimension_numbers = #tpu.dot_dimension_numbers<[1], [0], [0], [1], [0, 0, 1, 1], [], []>} : vector<16x16xf32>, vector<16x96xf32>, vector<16x96xf32> -> vector<16x96xf32>
    %c0_4 = arith.constant 0 : index
    %c0_5 = arith.constant 0 : index
    %4 = vector.load %arg3[%c0_4, %c0_5] : memref<1x96xf32, #tpu.memory_space<vmem>>, vector<1x96xf32>
    %5 = vector.broadcast %4 : vector<1x96xf32> to vector<16x96xf32>
    %6 = arith.addf %3, %5 : vector<16x96xf32>
    %7 = vector.shape_cast %6 : vector<16x96xf32> to vector<2x8x96xf32>
    %c0_6 = arith.constant 0 : index
    %c0_7 = arith.constant 0 : index
    %8 = vector.load %arg2[%c0_6, %c0_7] : memref<32x96xf32, #tpu.memory_space<vmem>>, vector<32x96xf32>
    %c0_8 = arith.constant 0 : index
    %c0_9 = arith.constant 0 : index
    %9 = vector.load %arg4[%c0_8, %c0_9] : memref<1x96xf32, #tpu.memory_space<vmem>>, vector<1x96xf32>
    %cst_10 = arith.constant 0.000000e+00 : f32
    %10 = vector.broadcast %cst_10 : f32 to vector<2x32xf32>
    %cst_11 = arith.constant dense<0.000000e+00> : vector<2x96xf32>
    %11 = tpu.matmul %10, %8, %cst_11 {dimension_numbers = #tpu.dot_dimension_numbers<[1], [0], [0], [1], [0, 0, 1, 1], [], []>} : vector<2x32xf32>, vector<32x96xf32>, vector<2x96xf32> -> vector<2x96xf32>
    %12 = vector.broadcast %9 : vector<1x96xf32> to vector<2x96xf32>
    %13 = arith.addf %11, %12 : vector<2x96xf32>
    %14 = vector.extract_strided_slice %7 {offsets = [0, 0, 0], sizes = [2, 1, 48], strides = [1, 1, 1]} : vector<2x8x96xf32> to vector<2x1x48xf32>
    %15 = vector.shape_cast %14 : vector<2x1x48xf32> to vector<2x48xf32>
    %16 = vector.extract_strided_slice %13 {offsets = [0, 0], sizes = [2, 48], strides = [1, 1]} : vector<2x96xf32> to vector<2x48xf32>
    %17 = vector.extract_strided_slice %10 {offsets = [0, 0], sizes = [2, 16], strides = [1, 1]} : vector<2x32xf32> to vector<2x16xf32>
    %18 = vector.extract_strided_slice %15 {offsets = [0, 0], sizes = [2, 16], strides = [1, 1]} : vector<2x48xf32> to vector<2x16xf32>
    %19 = vector.extract_strided_slice %16 {offsets = [0, 0], sizes = [2, 16], strides = [1, 1]} : vector<2x48xf32> to vector<2x16xf32>
    %20 = arith.addf %18, %19 : vector<2x16xf32>
    %21 = arith.negf %20 : vector<2x16xf32>
    %22 = math.exp %21 : vector<2x16xf32>
    %cst_12 = arith.constant 1.000000e+00 : f32
    %23 = vector.broadcast %cst_12 : f32 to vector<2x16xf32>
    %24 = arith.addf %23, %22 : vector<2x16xf32>
    %25 = arith.divf %23, %24 : vector<2x16xf32>
    %26 = vector.extract_strided_slice %15 {offsets = [0, 16], sizes = [2, 16], strides = [1, 1]} : vector<2x48xf32> to vector<2x16xf32>
    %27 = vector.extract_strided_slice %16 {offsets = [0, 16], sizes = [2, 16], strides = [1, 1]} : vector<2x48xf32> to vector<2x16xf32>
    %28 = arith.addf %26, %27 : vector<2x16xf32>
    %29 = arith.negf %28 : vector<2x16xf32>
    %30 = math.exp %29 : vector<2x16xf32>
    %cst_13 = arith.constant 1.000000e+00 : f32
    %31 = vector.broadcast %cst_13 : f32 to vector<2x16xf32>
    %32 = arith.addf %31, %30 : vector<2x16xf32>
    %33 = arith.divf %31, %32 : vector<2x16xf32>
    %34 = vector.extract_strided_slice %15 {offsets = [0, 32], sizes = [2, 16], strides = [1, 1]} : vector<2x48xf32> to vector<2x16xf32>
    %35 = vector.extract_strided_slice %16 {offsets = [0, 32], sizes = [2, 16], strides = [1, 1]} : vector<2x48xf32> to vector<2x16xf32>
    %36 = arith.mulf %25, %35 : vector<2x16xf32>
    %37 = arith.addf %34, %36 : vector<2x16xf32>
    %38 = math.tanh %37 : vector<2x16xf32>
    %cst_14 = arith.constant 1.000000e+00 : f32
    %39 = vector.broadcast %cst_14 : f32 to vector<2x16xf32>
    %40 = arith.subf %39, %33 : vector<2x16xf32>
    %41 = arith.mulf %40, %38 : vector<2x16xf32>
    %42 = arith.mulf %33, %17 : vector<2x16xf32>
    %43 = arith.addf %41, %42 : vector<2x16xf32>
    %44 = vector.extract_strided_slice %7 {offsets = [0, 7, 48], sizes = [2, 1, 48], strides = [1, 1, 1]} : vector<2x8x96xf32> to vector<2x1x48xf32>
    %45 = vector.shape_cast %44 : vector<2x1x48xf32> to vector<2x48xf32>
    %46 = vector.extract_strided_slice %13 {offsets = [0, 48], sizes = [2, 48], strides = [1, 1]} : vector<2x96xf32> to vector<2x48xf32>
    %47 = vector.extract_strided_slice %10 {offsets = [0, 16], sizes = [2, 16], strides = [1, 1]} : vector<2x32xf32> to vector<2x16xf32>
    %48 = vector.extract_strided_slice %45 {offsets = [0, 0], sizes = [2, 16], strides = [1, 1]} : vector<2x48xf32> to vector<2x16xf32>
    %49 = vector.extract_strided_slice %46 {offsets = [0, 0], sizes = [2, 16], strides = [1, 1]} : vector<2x48xf32> to vector<2x16xf32>
    %50 = arith.addf %48, %49 : vector<2x16xf32>
    %51 = arith.negf %50 : vector<2x16xf32>
    %52 = math.exp %51 : vector<2x16xf32>
    %cst_15 = arith.constant 1.000000e+00 : f32
    %53 = vector.broadcast %cst_15 : f32 to vector<2x16xf32>
    %54 = arith.addf %53, %52 : vector<2x16xf32>
    %55 = arith.divf %53, %54 : vector<2x16xf32>
    %56 = vector.extract_strided_slice %45 {offsets = [0, 16], sizes = [2, 16], strides = [1, 1]} : vector<2x48xf32> to vector<2x16xf32>
    %57 = vector.extract_strided_slice %46 {offsets = [0, 16], sizes = [2, 16], strides = [1, 1]} : vector<2x48xf32> to vector<2x16xf32>
    %58 = arith.addf %56, %57 : vector<2x16xf32>
    %59 = arith.negf %58 : vector<2x16xf32>
    %60 = math.exp %59 : vector<2x16xf32>
    %cst_16 = arith.constant 1.000000e+00 : f32
    %61 = vector.broadcast %cst_16 : f32 to vector<2x16xf32>
    %62 = arith.addf %61, %60 : vector<2x16xf32>
    %63 = arith.divf %61, %62 : vector<2x16xf32>
    %64 = vector.extract_strided_slice %45 {offsets = [0, 32], sizes = [2, 16], strides = [1, 1]} : vector<2x48xf32> to vector<2x16xf32>
    %65 = vector.extract_strided_slice %46 {offsets = [0, 32], sizes = [2, 16], strides = [1, 1]} : vector<2x48xf32> to vector<2x16xf32>
    %66 = arith.mulf %55, %65 : vector<2x16xf32>
    %67 = arith.addf %64, %66 : vector<2x16xf32>
    %68 = math.tanh %67 : vector<2x16xf32>
    %cst_17 = arith.constant 1.000000e+00 : f32
    %69 = vector.broadcast %cst_17 : f32 to vector<2x16xf32>
    %70 = arith.subf %69, %63 : vector<2x16xf32>
    %71 = arith.mulf %70, %68 : vector<2x16xf32>
    %72 = arith.mulf %63, %47 : vector<2x16xf32>
    %73 = arith.addf %71, %72 : vector<2x16xf32>
    %74 = tpu.concatenate %43, %73 in 1 : vector<2x16xf32>, vector<2x16xf32> -> vector<2x32xf32>
    %c0_18 = arith.constant 0 : index
    %c0_19 = arith.constant 0 : index
    %c0_20 = arith.constant 0 : index
    %75 = vector.load %arg5[%c0_18, %c0_19, %c0_20] : memref<2x8x32xf32, #tpu.memory_space<vmem>>, vector<2x1x16xf32>
    %76 = vector.shape_cast %75 : vector<2x1x16xf32> to vector<2x16xf32>
    %77 = vector.shape_cast %43 : vector<2x16xf32> to vector<2x1x16xf32>
    tpu.vector_store %arg5[%c0_18, %c0_19, %c0_20], %77 {strides = array<i32>} : memref<2x8x32xf32, #tpu.memory_space<vmem>>, vector<2x1x16xf32>,
    %c0_21 = arith.constant 0 : index
    %c7 = arith.constant 7 : index
    %c16 = arith.constant 16 : index
    %78 = vector.load %arg5[%c0_21, %c7, %c16] : memref<2x8x32xf32, #tpu.memory_space<vmem>>, vector<2x1x16xf32>
    %79 = vector.shape_cast %78 : vector<2x1x16xf32> to vector<2x16xf32>
    %80 = vector.shape_cast %73 : vector<2x16xf32> to vector<2x1x16xf32>
    tpu.vector_store %arg5[%c0_21, %c7, %c16], %80 {strides = array<i32>} : memref<2x8x32xf32, #tpu.memory_space<vmem>>, vector<2x1x16xf32>,
    %cst_22 = arith.constant dense<0.000000e+00> : vector<2x96xf32>
    %81 = tpu.matmul %74, %8, %cst_22 {dimension_numbers = #tpu.dot_dimension_numbers<[1], [0], [0], [1], [0, 0, 1, 1], [], []>} : vector<2x32xf32>, vector<32x96xf32>, vector<2x96xf32> -> vector<2x96xf32>
    %82 = vector.broadcast %9 : vector<1x96xf32> to vector<2x96xf32>
    %83 = arith.addf %81, %82 : vector<2x96xf32>
    %84 = vector.extract_strided_slice %7 {offsets = [0, 1, 0], sizes = [2, 1, 48], strides = [1, 1, 1]} : vector<2x8x96xf32> to vector<2x1x48xf32>
    %85 = vector.shape_cast %84 : vector<2x1x48xf32> to vector<2x48xf32>
    %86 = vector.extract_strided_slice %83 {offsets = [0, 0], sizes = [2, 48], strides = [1, 1]} : vector<2x96xf32> to vector<2x48xf32>
    %87 = vector.extract_strided_slice %74 {offsets = [0, 0], sizes = [2, 16], strides = [1, 1]} : vector<2x32xf32> to vector<2x16xf32>
    %88 = vector.extract_strided_slice %85 {offsets = [0, 0], sizes = [2, 16], strides = [1, 1]} : vector<2x48xf32> to vector<2x16xf32>
    %89 = vector.extract_strided_slice %86 {offsets = [0, 0], sizes = [2, 16], strides = [1, 1]} : vector<2x48xf32> to vector<2x16xf32>
    %90 = arith.addf %88, %89 : vector<2x16xf32>
    %91 = arith.negf %90 : vector<2x16xf32>
    %92 = math.exp %91 : vector<2x16xf32>
    %cst_23 = arith.constant 1.000000e+00 : f32
    %93 = vector.broadcast %cst_23 : f32 to vector<2x16xf32>
    %94 = arith.addf %93, %92 : vector<2x16xf32>
    %95 = arith.divf %93, %94 : vector<2x16xf32>
    %96 = vector.extract_strided_slice %85 {offsets = [0, 16], sizes = [2, 16], strides = [1, 1]} : vector<2x48xf32> to vector<2x16xf32>
    %97 = vector.extract_strided_slice %86 {offsets = [0, 16], sizes = [2, 16], strides = [1, 1]} : vector<2x48xf32> to vector<2x16xf32>
    %98 = arith.addf %96, %97 : vector<2x16xf32>
    %99 = arith.negf %98 : vector<2x16xf32>
    %100 = math.exp %99 : vector<2x16xf32>
    %cst_24 = arith.constant 1.000000e+00 : f32
    %101 = vector.broadcast %cst_24 : f32 to vector<2x16xf32>
    %102 = arith.addf %101, %100 : vector<2x16xf32>
    %103 = arith.divf %101, %102 : vector<2x16xf32>
    %104 = vector.extract_strided_slice %85 {offsets = [0, 32], sizes = [2, 16], strides = [1, 1]} : vector<2x48xf32> to vector<2x16xf32>
    %105 = vector.extract_strided_slice %86 {offsets = [0, 32], sizes = [2, 16], strides = [1, 1]} : vector<2x48xf32> to vector<2x16xf32>
    %106 = arith.mulf %95, %105 : vector<2x16xf32>
    %107 = arith.addf %104, %106 : vector<2x16xf32>
    %108 = math.tanh %107 : vector<2x16xf32>
    %cst_25 = arith.constant 1.000000e+00 : f32
    %109 = vector.broadcast %cst_25 : f32 to vector<2x16xf32>
    %110 = arith.subf %109, %103 : vector<2x16xf32>
    %111 = arith.mulf %110, %108 : vector<2x16xf32>
    %112 = arith.mulf %103, %87 : vector<2x16xf32>
    %113 = arith.addf %111, %112 : vector<2x16xf32>
    %114 = vector.extract_strided_slice %7 {offsets = [0, 6, 48], sizes = [2, 1, 48], strides = [1, 1, 1]} : vector<2x8x96xf32> to vector<2x1x48xf32>
    %115 = vector.shape_cast %114 : vector<2x1x48xf32> to vector<2x48xf32>
    %116 = vector.extract_strided_slice %83 {offsets = [0, 48], sizes = [2, 48], strides = [1, 1]} : vector<2x96xf32> to vector<2x48xf32>
    %117 = vector.extract_strided_slice %74 {offsets = [0, 16], sizes = [2, 16], strides = [1, 1]} : vector<2x32xf32> to vector<2x16xf32>
    %118 = vector.extract_strided_slice %115 {offsets = [0, 0], sizes = [2, 16], strides = [1, 1]} : vector<2x48xf32> to vector<2x16xf32>
    %119 = vector.extract_strided_slice %116 {offsets = [0, 0], sizes = [2, 16], strides = [1, 1]} : vector<2x48xf32> to vector<2x16xf32>
    %120 = arith.addf %118, %119 : vector<2x16xf32>
    %121 = arith.negf %120 : vector<2x16xf32>
    %122 = math.exp %121 : vector<2x16xf32>
    %cst_26 = arith.constant 1.000000e+00 : f32
    %123 = vector.broadcast %cst_26 : f32 to vector<2x16xf32>
    %124 = arith.addf %123, %122 : vector<2x16xf32>
    %125 = arith.divf %123, %124 : vector<2x16xf32>
    %126 = vector.extract_strided_slice %115 {offsets = [0, 16], sizes = [2, 16], strides = [1, 1]} : vector<2x48xf32> to vector<2x16xf32>
    %127 = vector.extract_strided_slice %116 {offsets = [0, 16], sizes = [2, 16], strides = [1, 1]} : vector<2x48xf32> to vector<2x16xf32>
    %128 = arith.addf %126, %127 : vector<2x16xf32>
    %129 = arith.negf %128 : vector<2x16xf32>
    %130 = math.exp %129 : vector<2x16xf32>
    %cst_27 = arith.constant 1.000000e+00 : f32
    %131 = vector.broadcast %cst_27 : f32 to vector<2x16xf32>
    %132 = arith.addf %131, %130 : vector<2x16xf32>
    %133 = arith.divf %131, %132 : vector<2x16xf32>
    %134 = vector.extract_strided_slice %115 {offsets = [0, 32], sizes = [2, 16], strides = [1, 1]} : vector<2x48xf32> to vector<2x16xf32>
    %135 = vector.extract_strided_slice %116 {offsets = [0, 32], sizes = [2, 16], strides = [1, 1]} : vector<2x48xf32> to vector<2x16xf32>
    %136 = arith.mulf %125, %135 : vector<2x16xf32>
    %137 = arith.addf %134, %136 : vector<2x16xf32>
    %138 = math.tanh %137 : vector<2x16xf32>
    %cst_28 = arith.constant 1.000000e+00 : f32
    %139 = vector.broadcast %cst_28 : f32 to vector<2x16xf32>
    %140 = arith.subf %139, %133 : vector<2x16xf32>
    %141 = arith.mulf %140, %138 : vector<2x16xf32>
    %142 = arith.mulf %133, %117 : vector<2x16xf32>
    %143 = arith.addf %141, %142 : vector<2x16xf32>
    %144 = tpu.concatenate %113, %143 in 1 : vector<2x16xf32>, vector<2x16xf32> -> vector<2x32xf32>
    %c0_29 = arith.constant 0 : index
    %c1 = arith.constant 1 : index
    %c0_30 = arith.constant 0 : index
    %145 = vector.load %arg5[%c0_29, %c1, %c0_30] : memref<2x8x32xf32, #tpu.memory_space<vmem>>, vector<2x1x16xf32>
    %146 = vector.shape_cast %145 : vector<2x1x16xf32> to vector<2x16xf32>
    %147 = vector.shape_cast %113 : vector<2x16xf32> to vector<2x1x16xf32>
    tpu.vector_store %arg5[%c0_29, %c1, %c0_30], %147 {strides = array<i32>} : memref<2x8x32xf32, #tpu.memory_space<vmem>>, vector<2x1x16xf32>,
    %c0_31 = arith.constant 0 : index
    %c6 = arith.constant 6 : index
    %c16_32 = arith.constant 16 : index
    %148 = vector.load %arg5[%c0_31, %c6, %c16_32] : memref<2x8x32xf32, #tpu.memory_space<vmem>>, vector<2x1x16xf32>
    %149 = vector.shape_cast %148 : vector<2x1x16xf32> to vector<2x16xf32>
    %150 = vector.shape_cast %143 : vector<2x16xf32> to vector<2x1x16xf32>
    tpu.vector_store %arg5[%c0_31, %c6, %c16_32], %150 {strides = array<i32>} : memref<2x8x32xf32, #tpu.memory_space<vmem>>, vector<2x1x16xf32>,
    %cst_33 = arith.constant dense<0.000000e+00> : vector<2x96xf32>
    %151 = tpu.matmul %144, %8, %cst_33 {dimension_numbers = #tpu.dot_dimension_numbers<[1], [0], [0], [1], [0, 0, 1, 1], [], []>} : vector<2x32xf32>, vector<32x96xf32>, vector<2x96xf32> -> vector<2x96xf32>
    %152 = vector.broadcast %9 : vector<1x96xf32> to vector<2x96xf32>
    %153 = arith.addf %151, %152 : vector<2x96xf32>
    %154 = vector.extract_strided_slice %7 {offsets = [0, 2, 0], sizes = [2, 1, 48], strides = [1, 1, 1]} : vector<2x8x96xf32> to vector<2x1x48xf32>
    %155 = vector.shape_cast %154 : vector<2x1x48xf32> to vector<2x48xf32>
    %156 = vector.extract_strided_slice %153 {offsets = [0, 0], sizes = [2, 48], strides = [1, 1]} : vector<2x96xf32> to vector<2x48xf32>
    %157 = vector.extract_strided_slice %144 {offsets = [0, 0], sizes = [2, 16], strides = [1, 1]} : vector<2x32xf32> to vector<2x16xf32>
    %158 = vector.extract_strided_slice %155 {offsets = [0, 0], sizes = [2, 16], strides = [1, 1]} : vector<2x48xf32> to vector<2x16xf32>
    %159 = vector.extract_strided_slice %156 {offsets = [0, 0], sizes = [2, 16], strides = [1, 1]} : vector<2x48xf32> to vector<2x16xf32>
    %160 = arith.addf %158, %159 : vector<2x16xf32>
    %161 = arith.negf %160 : vector<2x16xf32>
    %162 = math.exp %161 : vector<2x16xf32>
    %cst_34 = arith.constant 1.000000e+00 : f32
    %163 = vector.broadcast %cst_34 : f32 to vector<2x16xf32>
    %164 = arith.addf %163, %162 : vector<2x16xf32>
    %165 = arith.divf %163, %164 : vector<2x16xf32>
    %166 = vector.extract_strided_slice %155 {offsets = [0, 16], sizes = [2, 16], strides = [1, 1]} : vector<2x48xf32> to vector<2x16xf32>
    %167 = vector.extract_strided_slice %156 {offsets = [0, 16], sizes = [2, 16], strides = [1, 1]} : vector<2x48xf32> to vector<2x16xf32>
    %168 = arith.addf %166, %167 : vector<2x16xf32>
    %169 = arith.negf %168 : vector<2x16xf32>
    %170 = math.exp %169 : vector<2x16xf32>
    %cst_35 = arith.constant 1.000000e+00 : f32
    %171 = vector.broadcast %cst_35 : f32 to vector<2x16xf32>
    %172 = arith.addf %171, %170 : vector<2x16xf32>
    %173 = arith.divf %171, %172 : vector<2x16xf32>
    %174 = vector.extract_strided_slice %155 {offsets = [0, 32], sizes = [2, 16], strides = [1, 1]} : vector<2x48xf32> to vector<2x16xf32>
    %175 = vector.extract_strided_slice %156 {offsets = [0, 32], sizes = [2, 16], strides = [1, 1]} : vector<2x48xf32> to vector<2x16xf32>
    %176 = arith.mulf %165, %175 : vector<2x16xf32>
    %177 = arith.addf %174, %176 : vector<2x16xf32>
    %178 = math.tanh %177 : vector<2x16xf32>
    %cst_36 = arith.constant 1.000000e+00 : f32
    %179 = vector.broadcast %cst_36 : f32 to vector<2x16xf32>
    %180 = arith.subf %179, %173 : vector<2x16xf32>
    %181 = arith.mulf %180, %178 : vector<2x16xf32>
    %182 = arith.mulf %173, %157 : vector<2x16xf32>
    %183 = arith.addf %181, %182 : vector<2x16xf32>
    %184 = vector.extract_strided_slice %7 {offsets = [0, 5, 48], sizes = [2, 1, 48], strides = [1, 1, 1]} : vector<2x8x96xf32> to vector<2x1x48xf32>
    %185 = vector.shape_cast %184 : vector<2x1x48xf32> to vector<2x48xf32>
    %186 = vector.extract_strided_slice %153 {offsets = [0, 48], sizes = [2, 48], strides = [1, 1]} : vector<2x96xf32> to vector<2x48xf32>
    %187 = vector.extract_strided_slice %144 {offsets = [0, 16], sizes = [2, 16], strides = [1, 1]} : vector<2x32xf32> to vector<2x16xf32>
    %188 = vector.extract_strided_slice %185 {offsets = [0, 0], sizes = [2, 16], strides = [1, 1]} : vector<2x48xf32> to vector<2x16xf32>
    %189 = vector.extract_strided_slice %186 {offsets = [0, 0], sizes = [2, 16], strides = [1, 1]} : vector<2x48xf32> to vector<2x16xf32>
    %190 = arith.addf %188, %189 : vector<2x16xf32>
    %191 = arith.negf %190 : vector<2x16xf32>
    %192 = math.exp %191 : vector<2x16xf32>
    %cst_37 = arith.constant 1.000000e+00 : f32
    %193 = vector.broadcast %cst_37 : f32 to vector<2x16xf32>
    %194 = arith.addf %193, %192 : vector<2x16xf32>
    %195 = arith.divf %193, %194 : vector<2x16xf32>
    %196 = vector.extract_strided_slice %185 {offsets = [0, 16], sizes = [2, 16], strides = [1, 1]} : vector<2x48xf32> to vector<2x16xf32>
    %197 = vector.extract_strided_slice %186 {offsets = [0, 16], sizes = [2, 16], strides = [1, 1]} : vector<2x48xf32> to vector<2x16xf32>
    %198 = arith.addf %196, %197 : vector<2x16xf32>
    %199 = arith.negf %198 : vector<2x16xf32>
    %200 = math.exp %199 : vector<2x16xf32>
    %cst_38 = arith.constant 1.000000e+00 : f32
    %201 = vector.broadcast %cst_38 : f32 to vector<2x16xf32>
    %202 = arith.addf %201, %200 : vector<2x16xf32>
    %203 = arith.divf %201, %202 : vector<2x16xf32>
    %204 = vector.extract_strided_slice %185 {offsets = [0, 32], sizes = [2, 16], strides = [1, 1]} : vector<2x48xf32> to vector<2x16xf32>
    %205 = vector.extract_strided_slice %186 {offsets = [0, 32], sizes = [2, 16], strides = [1, 1]} : vector<2x48xf32> to vector<2x16xf32>
    %206 = arith.mulf %195, %205 : vector<2x16xf32>
    %207 = arith.addf %204, %206 : vector<2x16xf32>
    %208 = math.tanh %207 : vector<2x16xf32>
    %cst_39 = arith.constant 1.000000e+00 : f32
    %209 = vector.broadcast %cst_39 : f32 to vector<2x16xf32>
    %210 = arith.subf %209, %203 : vector<2x16xf32>
    %211 = arith.mulf %210, %208 : vector<2x16xf32>
    %212 = arith.mulf %203, %187 : vector<2x16xf32>
    %213 = arith.addf %211, %212 : vector<2x16xf32>
    %214 = tpu.concatenate %183, %213 in 1 : vector<2x16xf32>, vector<2x16xf32> -> vector<2x32xf32>
    %c0_40 = arith.constant 0 : index
    %c2 = arith.constant 2 : index
    %c0_41 = arith.constant 0 : index
    %215 = vector.load %arg5[%c0_40, %c2, %c0_41] : memref<2x8x32xf32, #tpu.memory_space<vmem>>, vector<2x1x16xf32>
    %216 = vector.shape_cast %215 : vector<2x1x16xf32> to vector<2x16xf32>
    %217 = vector.shape_cast %183 : vector<2x16xf32> to vector<2x1x16xf32>
    tpu.vector_store %arg5[%c0_40, %c2, %c0_41], %217 {strides = array<i32>} : memref<2x8x32xf32, #tpu.memory_space<vmem>>, vector<2x1x16xf32>,
    %c0_42 = arith.constant 0 : index
    %c5 = arith.constant 5 : index
    %c16_43 = arith.constant 16 : index
    %218 = vector.load %arg5[%c0_42, %c5, %c16_43] : memref<2x8x32xf32, #tpu.memory_space<vmem>>, vector<2x1x16xf32>
    %219 = vector.shape_cast %218 : vector<2x1x16xf32> to vector<2x16xf32>
    %220 = vector.shape_cast %213 : vector<2x16xf32> to vector<2x1x16xf32>
    tpu.vector_store %arg5[%c0_42, %c5, %c16_43], %220 {strides = array<i32>} : memref<2x8x32xf32, #tpu.memory_space<vmem>>, vector<2x1x16xf32>,
    %cst_44 = arith.constant dense<0.000000e+00> : vector<2x96xf32>
    %221 = tpu.matmul %214, %8, %cst_44 {dimension_numbers = #tpu.dot_dimension_numbers<[1], [0], [0], [1], [0, 0, 1, 1], [], []>} : vector<2x32xf32>, vector<32x96xf32>, vector<2x96xf32> -> vector<2x96xf32>
    %222 = vector.broadcast %9 : vector<1x96xf32> to vector<2x96xf32>
    %223 = arith.addf %221, %222 : vector<2x96xf32>
    %224 = vector.extract_strided_slice %7 {offsets = [0, 3, 0], sizes = [2, 1, 48], strides = [1, 1, 1]} : vector<2x8x96xf32> to vector<2x1x48xf32>
    %225 = vector.shape_cast %224 : vector<2x1x48xf32> to vector<2x48xf32>
    %226 = vector.extract_strided_slice %223 {offsets = [0, 0], sizes = [2, 48], strides = [1, 1]} : vector<2x96xf32> to vector<2x48xf32>
    %227 = vector.extract_strided_slice %214 {offsets = [0, 0], sizes = [2, 16], strides = [1, 1]} : vector<2x32xf32> to vector<2x16xf32>
    %228 = vector.extract_strided_slice %225 {offsets = [0, 0], sizes = [2, 16], strides = [1, 1]} : vector<2x48xf32> to vector<2x16xf32>
    %229 = vector.extract_strided_slice %226 {offsets = [0, 0], sizes = [2, 16], strides = [1, 1]} : vector<2x48xf32> to vector<2x16xf32>
    %230 = arith.addf %228, %229 : vector<2x16xf32>
    %231 = arith.negf %230 : vector<2x16xf32>
    %232 = math.exp %231 : vector<2x16xf32>
    %cst_45 = arith.constant 1.000000e+00 : f32
    %233 = vector.broadcast %cst_45 : f32 to vector<2x16xf32>
    %234 = arith.addf %233, %232 : vector<2x16xf32>
    %235 = arith.divf %233, %234 : vector<2x16xf32>
    %236 = vector.extract_strided_slice %225 {offsets = [0, 16], sizes = [2, 16], strides = [1, 1]} : vector<2x48xf32> to vector<2x16xf32>
    %237 = vector.extract_strided_slice %226 {offsets = [0, 16], sizes = [2, 16], strides = [1, 1]} : vector<2x48xf32> to vector<2x16xf32>
    %238 = arith.addf %236, %237 : vector<2x16xf32>
    %239 = arith.negf %238 : vector<2x16xf32>
    %240 = math.exp %239 : vector<2x16xf32>
    %cst_46 = arith.constant 1.000000e+00 : f32
    %241 = vector.broadcast %cst_46 : f32 to vector<2x16xf32>
    %242 = arith.addf %241, %240 : vector<2x16xf32>
    %243 = arith.divf %241, %242 : vector<2x16xf32>
    %244 = vector.extract_strided_slice %225 {offsets = [0, 32], sizes = [2, 16], strides = [1, 1]} : vector<2x48xf32> to vector<2x16xf32>
    %245 = vector.extract_strided_slice %226 {offsets = [0, 32], sizes = [2, 16], strides = [1, 1]} : vector<2x48xf32> to vector<2x16xf32>
    %246 = arith.mulf %235, %245 : vector<2x16xf32>
    %247 = arith.addf %244, %246 : vector<2x16xf32>
    %248 = math.tanh %247 : vector<2x16xf32>
    %cst_47 = arith.constant 1.000000e+00 : f32
    %249 = vector.broadcast %cst_47 : f32 to vector<2x16xf32>
    %250 = arith.subf %249, %243 : vector<2x16xf32>
    %251 = arith.mulf %250, %248 : vector<2x16xf32>
    %252 = arith.mulf %243, %227 : vector<2x16xf32>
    %253 = arith.addf %251, %252 : vector<2x16xf32>
    %254 = vector.extract_strided_slice %7 {offsets = [0, 4, 48], sizes = [2, 1, 48], strides = [1, 1, 1]} : vector<2x8x96xf32> to vector<2x1x48xf32>
    %255 = vector.shape_cast %254 : vector<2x1x48xf32> to vector<2x48xf32>
    %256 = vector.extract_strided_slice %223 {offsets = [0, 48], sizes = [2, 48], strides = [1, 1]} : vector<2x96xf32> to vector<2x48xf32>
    %257 = vector.extract_strided_slice %214 {offsets = [0, 16], sizes = [2, 16], strides = [1, 1]} : vector<2x32xf32> to vector<2x16xf32>
    %258 = vector.extract_strided_slice %255 {offsets = [0, 0], sizes = [2, 16], strides = [1, 1]} : vector<2x48xf32> to vector<2x16xf32>
    %259 = vector.extract_strided_slice %256 {offsets = [0, 0], sizes = [2, 16], strides = [1, 1]} : vector<2x48xf32> to vector<2x16xf32>
    %260 = arith.addf %258, %259 : vector<2x16xf32>
    %261 = arith.negf %260 : vector<2x16xf32>
    %262 = math.exp %261 : vector<2x16xf32>
    %cst_48 = arith.constant 1.000000e+00 : f32
    %263 = vector.broadcast %cst_48 : f32 to vector<2x16xf32>
    %264 = arith.addf %263, %262 : vector<2x16xf32>
    %265 = arith.divf %263, %264 : vector<2x16xf32>
    %266 = vector.extract_strided_slice %255 {offsets = [0, 16], sizes = [2, 16], strides = [1, 1]} : vector<2x48xf32> to vector<2x16xf32>
    %267 = vector.extract_strided_slice %256 {offsets = [0, 16], sizes = [2, 16], strides = [1, 1]} : vector<2x48xf32> to vector<2x16xf32>
    %268 = arith.addf %266, %267 : vector<2x16xf32>
    %269 = arith.negf %268 : vector<2x16xf32>
    %270 = math.exp %269 : vector<2x16xf32>
    %cst_49 = arith.constant 1.000000e+00 : f32
    %271 = vector.broadcast %cst_49 : f32 to vector<2x16xf32>
    %272 = arith.addf %271, %270 : vector<2x16xf32>
    %273 = arith.divf %271, %272 : vector<2x16xf32>
    %274 = vector.extract_strided_slice %255 {offsets = [0, 32], sizes = [2, 16], strides = [1, 1]} : vector<2x48xf32> to vector<2x16xf32>
    %275 = vector.extract_strided_slice %256 {offsets = [0, 32], sizes = [2, 16], strides = [1, 1]} : vector<2x48xf32> to vector<2x16xf32>
    %276 = arith.mulf %265, %275 : vector<2x16xf32>
    %277 = arith.addf %274, %276 : vector<2x16xf32>
    %278 = math.tanh %277 : vector<2x16xf32>
    %cst_50 = arith.constant 1.000000e+00 : f32
    %279 = vector.broadcast %cst_50 : f32 to vector<2x16xf32>
    %280 = arith.subf %279, %273 : vector<2x16xf32>
    %281 = arith.mulf %280, %278 : vector<2x16xf32>
    %282 = arith.mulf %273, %257 : vector<2x16xf32>
    %283 = arith.addf %281, %282 : vector<2x16xf32>
    %284 = tpu.concatenate %253, %283 in 1 : vector<2x16xf32>, vector<2x16xf32> -> vector<2x32xf32>
    %c0_51 = arith.constant 0 : index
    %c3 = arith.constant 3 : index
    %c0_52 = arith.constant 0 : index
    %285 = vector.load %arg5[%c0_51, %c3, %c0_52] : memref<2x8x32xf32, #tpu.memory_space<vmem>>, vector<2x1x16xf32>
    %286 = vector.shape_cast %285 : vector<2x1x16xf32> to vector<2x16xf32>
    %287 = vector.shape_cast %253 : vector<2x16xf32> to vector<2x1x16xf32>
    tpu.vector_store %arg5[%c0_51, %c3, %c0_52], %287 {strides = array<i32>} : memref<2x8x32xf32, #tpu.memory_space<vmem>>, vector<2x1x16xf32>,
    %c0_53 = arith.constant 0 : index
    %c4 = arith.constant 4 : index
    %c16_54 = arith.constant 16 : index
    %288 = vector.load %arg5[%c0_53, %c4, %c16_54] : memref<2x8x32xf32, #tpu.memory_space<vmem>>, vector<2x1x16xf32>
    %289 = vector.shape_cast %288 : vector<2x1x16xf32> to vector<2x16xf32>
    %290 = vector.shape_cast %283 : vector<2x16xf32> to vector<2x1x16xf32>
    tpu.vector_store %arg5[%c0_53, %c4, %c16_54], %290 {strides = array<i32>} : memref<2x8x32xf32, #tpu.memory_space<vmem>>, vector<2x1x16xf32>,
    %cst_55 = arith.constant dense<0.000000e+00> : vector<2x96xf32>
    %291 = tpu.matmul %284, %8, %cst_55 {dimension_numbers = #tpu.dot_dimension_numbers<[1], [0], [0], [1], [0, 0, 1, 1], [], []>} : vector<2x32xf32>, vector<32x96xf32>, vector<2x96xf32> -> vector<2x96xf32>
    %292 = vector.broadcast %9 : vector<1x96xf32> to vector<2x96xf32>
    %293 = arith.addf %291, %292 : vector<2x96xf32>
    %294 = vector.extract_strided_slice %7 {offsets = [0, 4, 0], sizes = [2, 1, 48], strides = [1, 1, 1]} : vector<2x8x96xf32> to vector<2x1x48xf32>
    %295 = vector.shape_cast %294 : vector<2x1x48xf32> to vector<2x48xf32>
    %296 = vector.extract_strided_slice %293 {offsets = [0, 0], sizes = [2, 48], strides = [1, 1]} : vector<2x96xf32> to vector<2x48xf32>
    %297 = vector.extract_strided_slice %284 {offsets = [0, 0], sizes = [2, 16], strides = [1, 1]} : vector<2x32xf32> to vector<2x16xf32>
    %298 = vector.extract_strided_slice %295 {offsets = [0, 0], sizes = [2, 16], strides = [1, 1]} : vector<2x48xf32> to vector<2x16xf32>
    %299 = vector.extract_strided_slice %296 {offsets = [0, 0], sizes = [2, 16], strides = [1, 1]} : vector<2x48xf32> to vector<2x16xf32>
    %300 = arith.addf %298, %299 : vector<2x16xf32>
    %301 = arith.negf %300 : vector<2x16xf32>
    %302 = math.exp %301 : vector<2x16xf32>
    %cst_56 = arith.constant 1.000000e+00 : f32
    %303 = vector.broadcast %cst_56 : f32 to vector<2x16xf32>
    %304 = arith.addf %303, %302 : vector<2x16xf32>
    %305 = arith.divf %303, %304 : vector<2x16xf32>
    %306 = vector.extract_strided_slice %295 {offsets = [0, 16], sizes = [2, 16], strides = [1, 1]} : vector<2x48xf32> to vector<2x16xf32>
    %307 = vector.extract_strided_slice %296 {offsets = [0, 16], sizes = [2, 16], strides = [1, 1]} : vector<2x48xf32> to vector<2x16xf32>
    %308 = arith.addf %306, %307 : vector<2x16xf32>
    %309 = arith.negf %308 : vector<2x16xf32>
    %310 = math.exp %309 : vector<2x16xf32>
    %cst_57 = arith.constant 1.000000e+00 : f32
    %311 = vector.broadcast %cst_57 : f32 to vector<2x16xf32>
    %312 = arith.addf %311, %310 : vector<2x16xf32>
    %313 = arith.divf %311, %312 : vector<2x16xf32>
    %314 = vector.extract_strided_slice %295 {offsets = [0, 32], sizes = [2, 16], strides = [1, 1]} : vector<2x48xf32> to vector<2x16xf32>
    %315 = vector.extract_strided_slice %296 {offsets = [0, 32], sizes = [2, 16], strides = [1, 1]} : vector<2x48xf32> to vector<2x16xf32>
    %316 = arith.mulf %305, %315 : vector<2x16xf32>
    %317 = arith.addf %314, %316 : vector<2x16xf32>
    %318 = math.tanh %317 : vector<2x16xf32>
    %cst_58 = arith.constant 1.000000e+00 : f32
    %319 = vector.broadcast %cst_58 : f32 to vector<2x16xf32>
    %320 = arith.subf %319, %313 : vector<2x16xf32>
    %321 = arith.mulf %320, %318 : vector<2x16xf32>
    %322 = arith.mulf %313, %297 : vector<2x16xf32>
    %323 = arith.addf %321, %322 : vector<2x16xf32>
    %324 = vector.extract_strided_slice %7 {offsets = [0, 3, 48], sizes = [2, 1, 48], strides = [1, 1, 1]} : vector<2x8x96xf32> to vector<2x1x48xf32>
    %325 = vector.shape_cast %324 : vector<2x1x48xf32> to vector<2x48xf32>
    %326 = vector.extract_strided_slice %293 {offsets = [0, 48], sizes = [2, 48], strides = [1, 1]} : vector<2x96xf32> to vector<2x48xf32>
    %327 = vector.extract_strided_slice %284 {offsets = [0, 16], sizes = [2, 16], strides = [1, 1]} : vector<2x32xf32> to vector<2x16xf32>
    %328 = vector.extract_strided_slice %325 {offsets = [0, 0], sizes = [2, 16], strides = [1, 1]} : vector<2x48xf32> to vector<2x16xf32>
    %329 = vector.extract_strided_slice %326 {offsets = [0, 0], sizes = [2, 16], strides = [1, 1]} : vector<2x48xf32> to vector<2x16xf32>
    %330 = arith.addf %328, %329 : vector<2x16xf32>
    %331 = arith.negf %330 : vector<2x16xf32>
    %332 = math.exp %331 : vector<2x16xf32>
    %cst_59 = arith.constant 1.000000e+00 : f32
    %333 = vector.broadcast %cst_59 : f32 to vector<2x16xf32>
    %334 = arith.addf %333, %332 : vector<2x16xf32>
    %335 = arith.divf %333, %334 : vector<2x16xf32>
    %336 = vector.extract_strided_slice %325 {offsets = [0, 16], sizes = [2, 16], strides = [1, 1]} : vector<2x48xf32> to vector<2x16xf32>
    %337 = vector.extract_strided_slice %326 {offsets = [0, 16], sizes = [2, 16], strides = [1, 1]} : vector<2x48xf32> to vector<2x16xf32>
    %338 = arith.addf %336, %337 : vector<2x16xf32>
    %339 = arith.negf %338 : vector<2x16xf32>
    %340 = math.exp %339 : vector<2x16xf32>
    %cst_60 = arith.constant 1.000000e+00 : f32
    %341 = vector.broadcast %cst_60 : f32 to vector<2x16xf32>
    %342 = arith.addf %341, %340 : vector<2x16xf32>
    %343 = arith.divf %341, %342 : vector<2x16xf32>
    %344 = vector.extract_strided_slice %325 {offsets = [0, 32], sizes = [2, 16], strides = [1, 1]} : vector<2x48xf32> to vector<2x16xf32>
    %345 = vector.extract_strided_slice %326 {offsets = [0, 32], sizes = [2, 16], strides = [1, 1]} : vector<2x48xf32> to vector<2x16xf32>
    %346 = arith.mulf %335, %345 : vector<2x16xf32>
    %347 = arith.addf %344, %346 : vector<2x16xf32>
    %348 = math.tanh %347 : vector<2x16xf32>
    %cst_61 = arith.constant 1.000000e+00 : f32
    %349 = vector.broadcast %cst_61 : f32 to vector<2x16xf32>
    %350 = arith.subf %349, %343 : vector<2x16xf32>
    %351 = arith.mulf %350, %348 : vector<2x16xf32>
    %352 = arith.mulf %343, %327 : vector<2x16xf32>
    %353 = arith.addf %351, %352 : vector<2x16xf32>
    %354 = tpu.concatenate %323, %353 in 1 : vector<2x16xf32>, vector<2x16xf32> -> vector<2x32xf32>
    %c0_62 = arith.constant 0 : index
    %c4_63 = arith.constant 4 : index
    %c0_64 = arith.constant 0 : index
    %355 = vector.load %arg5[%c0_62, %c4_63, %c0_64] : memref<2x8x32xf32, #tpu.memory_space<vmem>>, vector<2x1x16xf32>
    %356 = vector.shape_cast %355 : vector<2x1x16xf32> to vector<2x16xf32>
    %357 = vector.shape_cast %323 : vector<2x16xf32> to vector<2x1x16xf32>
    tpu.vector_store %arg5[%c0_62, %c4_63, %c0_64], %357 {strides = array<i32>} : memref<2x8x32xf32, #tpu.memory_space<vmem>>, vector<2x1x16xf32>,
    %c0_65 = arith.constant 0 : index
    %c3_66 = arith.constant 3 : index
    %c16_67 = arith.constant 16 : index
    %358 = vector.load %arg5[%c0_65, %c3_66, %c16_67] : memref<2x8x32xf32, #tpu.memory_space<vmem>>, vector<2x1x16xf32>
    %359 = vector.shape_cast %358 : vector<2x1x16xf32> to vector<2x16xf32>
    %360 = vector.shape_cast %353 : vector<2x16xf32> to vector<2x1x16xf32>
    tpu.vector_store %arg5[%c0_65, %c3_66, %c16_67], %360 {strides = array<i32>} : memref<2x8x32xf32, #tpu.memory_space<vmem>>, vector<2x1x16xf32>,
    %cst_68 = arith.constant dense<0.000000e+00> : vector<2x96xf32>
    %361 = tpu.matmul %354, %8, %cst_68 {dimension_numbers = #tpu.dot_dimension_numbers<[1], [0], [0], [1], [0, 0, 1, 1], [], []>} : vector<2x32xf32>, vector<32x96xf32>, vector<2x96xf32> -> vector<2x96xf32>
    %362 = vector.broadcast %9 : vector<1x96xf32> to vector<2x96xf32>
    %363 = arith.addf %361, %362 : vector<2x96xf32>
    %364 = vector.extract_strided_slice %7 {offsets = [0, 5, 0], sizes = [2, 1, 48], strides = [1, 1, 1]} : vector<2x8x96xf32> to vector<2x1x48xf32>
    %365 = vector.shape_cast %364 : vector<2x1x48xf32> to vector<2x48xf32>
    %366 = vector.extract_strided_slice %363 {offsets = [0, 0], sizes = [2, 48], strides = [1, 1]} : vector<2x96xf32> to vector<2x48xf32>
    %367 = vector.extract_strided_slice %354 {offsets = [0, 0], sizes = [2, 16], strides = [1, 1]} : vector<2x32xf32> to vector<2x16xf32>
    %368 = vector.extract_strided_slice %365 {offsets = [0, 0], sizes = [2, 16], strides = [1, 1]} : vector<2x48xf32> to vector<2x16xf32>
    %369 = vector.extract_strided_slice %366 {offsets = [0, 0], sizes = [2, 16], strides = [1, 1]} : vector<2x48xf32> to vector<2x16xf32>
    %370 = arith.addf %368, %369 : vector<2x16xf32>
    %371 = arith.negf %370 : vector<2x16xf32>
    %372 = math.exp %371 : vector<2x16xf32>
    %cst_69 = arith.constant 1.000000e+00 : f32
    %373 = vector.broadcast %cst_69 : f32 to vector<2x16xf32>
    %374 = arith.addf %373, %372 : vector<2x16xf32>
    %375 = arith.divf %373, %374 : vector<2x16xf32>
    %376 = vector.extract_strided_slice %365 {offsets = [0, 16], sizes = [2, 16], strides = [1, 1]} : vector<2x48xf32> to vector<2x16xf32>
    %377 = vector.extract_strided_slice %366 {offsets = [0, 16], sizes = [2, 16], strides = [1, 1]} : vector<2x48xf32> to vector<2x16xf32>
    %378 = arith.addf %376, %377 : vector<2x16xf32>
    %379 = arith.negf %378 : vector<2x16xf32>
    %380 = math.exp %379 : vector<2x16xf32>
    %cst_70 = arith.constant 1.000000e+00 : f32
    %381 = vector.broadcast %cst_70 : f32 to vector<2x16xf32>
    %382 = arith.addf %381, %380 : vector<2x16xf32>
    %383 = arith.divf %381, %382 : vector<2x16xf32>
    %384 = vector.extract_strided_slice %365 {offsets = [0, 32], sizes = [2, 16], strides = [1, 1]} : vector<2x48xf32> to vector<2x16xf32>
    %385 = vector.extract_strided_slice %366 {offsets = [0, 32], sizes = [2, 16], strides = [1, 1]} : vector<2x48xf32> to vector<2x16xf32>
    %386 = arith.mulf %375, %385 : vector<2x16xf32>
    %387 = arith.addf %384, %386 : vector<2x16xf32>
    %388 = math.tanh %387 : vector<2x16xf32>
    %cst_71 = arith.constant 1.000000e+00 : f32
    %389 = vector.broadcast %cst_71 : f32 to vector<2x16xf32>
    %390 = arith.subf %389, %383 : vector<2x16xf32>
    %391 = arith.mulf %390, %388 : vector<2x16xf32>
    %392 = arith.mulf %383, %367 : vector<2x16xf32>
    %393 = arith.addf %391, %392 : vector<2x16xf32>
    %394 = vector.extract_strided_slice %7 {offsets = [0, 2, 48], sizes = [2, 1, 48], strides = [1, 1, 1]} : vector<2x8x96xf32> to vector<2x1x48xf32>
    %395 = vector.shape_cast %394 : vector<2x1x48xf32> to vector<2x48xf32>
    %396 = vector.extract_strided_slice %363 {offsets = [0, 48], sizes = [2, 48], strides = [1, 1]} : vector<2x96xf32> to vector<2x48xf32>
    %397 = vector.extract_strided_slice %354 {offsets = [0, 16], sizes = [2, 16], strides = [1, 1]} : vector<2x32xf32> to vector<2x16xf32>
    %398 = vector.extract_strided_slice %395 {offsets = [0, 0], sizes = [2, 16], strides = [1, 1]} : vector<2x48xf32> to vector<2x16xf32>
    %399 = vector.extract_strided_slice %396 {offsets = [0, 0], sizes = [2, 16], strides = [1, 1]} : vector<2x48xf32> to vector<2x16xf32>
    %400 = arith.addf %398, %399 : vector<2x16xf32>
    %401 = arith.negf %400 : vector<2x16xf32>
    %402 = math.exp %401 : vector<2x16xf32>
    %cst_72 = arith.constant 1.000000e+00 : f32
    %403 = vector.broadcast %cst_72 : f32 to vector<2x16xf32>
    %404 = arith.addf %403, %402 : vector<2x16xf32>
    %405 = arith.divf %403, %404 : vector<2x16xf32>
    %406 = vector.extract_strided_slice %395 {offsets = [0, 16], sizes = [2, 16], strides = [1, 1]} : vector<2x48xf32> to vector<2x16xf32>
    %407 = vector.extract_strided_slice %396 {offsets = [0, 16], sizes = [2, 16], strides = [1, 1]} : vector<2x48xf32> to vector<2x16xf32>
    %408 = arith.addf %406, %407 : vector<2x16xf32>
    %409 = arith.negf %408 : vector<2x16xf32>
    %410 = math.exp %409 : vector<2x16xf32>
    %cst_73 = arith.constant 1.000000e+00 : f32
    %411 = vector.broadcast %cst_73 : f32 to vector<2x16xf32>
    %412 = arith.addf %411, %410 : vector<2x16xf32>
    %413 = arith.divf %411, %412 : vector<2x16xf32>
    %414 = vector.extract_strided_slice %395 {offsets = [0, 32], sizes = [2, 16], strides = [1, 1]} : vector<2x48xf32> to vector<2x16xf32>
    %415 = vector.extract_strided_slice %396 {offsets = [0, 32], sizes = [2, 16], strides = [1, 1]} : vector<2x48xf32> to vector<2x16xf32>
    %416 = arith.mulf %405, %415 : vector<2x16xf32>
    %417 = arith.addf %414, %416 : vector<2x16xf32>
    %418 = math.tanh %417 : vector<2x16xf32>
    %cst_74 = arith.constant 1.000000e+00 : f32
    %419 = vector.broadcast %cst_74 : f32 to vector<2x16xf32>
    %420 = arith.subf %419, %413 : vector<2x16xf32>
    %421 = arith.mulf %420, %418 : vector<2x16xf32>
    %422 = arith.mulf %413, %397 : vector<2x16xf32>
    %423 = arith.addf %421, %422 : vector<2x16xf32>
    %424 = tpu.concatenate %393, %423 in 1 : vector<2x16xf32>, vector<2x16xf32> -> vector<2x32xf32>
    %c0_75 = arith.constant 0 : index
    %c5_76 = arith.constant 5 : index
    %c0_77 = arith.constant 0 : index
    %425 = vector.load %arg5[%c0_75, %c5_76, %c0_77] : memref<2x8x32xf32, #tpu.memory_space<vmem>>, vector<2x1x16xf32>
    %426 = vector.shape_cast %425 : vector<2x1x16xf32> to vector<2x16xf32>
    %427 = vector.shape_cast %393 : vector<2x16xf32> to vector<2x1x16xf32>
    tpu.vector_store %arg5[%c0_75, %c5_76, %c0_77], %427 {strides = array<i32>} : memref<2x8x32xf32, #tpu.memory_space<vmem>>, vector<2x1x16xf32>,
    %c0_78 = arith.constant 0 : index
    %c2_79 = arith.constant 2 : index
    %c16_80 = arith.constant 16 : index
    %428 = vector.load %arg5[%c0_78, %c2_79, %c16_80] : memref<2x8x32xf32, #tpu.memory_space<vmem>>, vector<2x1x16xf32>
    %429 = vector.shape_cast %428 : vector<2x1x16xf32> to vector<2x16xf32>
    %430 = vector.shape_cast %423 : vector<2x16xf32> to vector<2x1x16xf32>
    tpu.vector_store %arg5[%c0_78, %c2_79, %c16_80], %430 {strides = array<i32>} : memref<2x8x32xf32, #tpu.memory_space<vmem>>, vector<2x1x16xf32>,
    %cst_81 = arith.constant dense<0.000000e+00> : vector<2x96xf32>
    %431 = tpu.matmul %424, %8, %cst_81 {dimension_numbers = #tpu.dot_dimension_numbers<[1], [0], [0], [1], [0, 0, 1, 1], [], []>} : vector<2x32xf32>, vector<32x96xf32>, vector<2x96xf32> -> vector<2x96xf32>
    %432 = vector.broadcast %9 : vector<1x96xf32> to vector<2x96xf32>
    %433 = arith.addf %431, %432 : vector<2x96xf32>
    %434 = vector.extract_strided_slice %7 {offsets = [0, 6, 0], sizes = [2, 1, 48], strides = [1, 1, 1]} : vector<2x8x96xf32> to vector<2x1x48xf32>
    %435 = vector.shape_cast %434 : vector<2x1x48xf32> to vector<2x48xf32>
    %436 = vector.extract_strided_slice %433 {offsets = [0, 0], sizes = [2, 48], strides = [1, 1]} : vector<2x96xf32> to vector<2x48xf32>
    %437 = vector.extract_strided_slice %424 {offsets = [0, 0], sizes = [2, 16], strides = [1, 1]} : vector<2x32xf32> to vector<2x16xf32>
    %438 = vector.extract_strided_slice %435 {offsets = [0, 0], sizes = [2, 16], strides = [1, 1]} : vector<2x48xf32> to vector<2x16xf32>
    %439 = vector.extract_strided_slice %436 {offsets = [0, 0], sizes = [2, 16], strides = [1, 1]} : vector<2x48xf32> to vector<2x16xf32>
    %440 = arith.addf %438, %439 : vector<2x16xf32>
    %441 = arith.negf %440 : vector<2x16xf32>
    %442 = math.exp %441 : vector<2x16xf32>
    %cst_82 = arith.constant 1.000000e+00 : f32
    %443 = vector.broadcast %cst_82 : f32 to vector<2x16xf32>
    %444 = arith.addf %443, %442 : vector<2x16xf32>
    %445 = arith.divf %443, %444 : vector<2x16xf32>
    %446 = vector.extract_strided_slice %435 {offsets = [0, 16], sizes = [2, 16], strides = [1, 1]} : vector<2x48xf32> to vector<2x16xf32>
    %447 = vector.extract_strided_slice %436 {offsets = [0, 16], sizes = [2, 16], strides = [1, 1]} : vector<2x48xf32> to vector<2x16xf32>
    %448 = arith.addf %446, %447 : vector<2x16xf32>
    %449 = arith.negf %448 : vector<2x16xf32>
    %450 = math.exp %449 : vector<2x16xf32>
    %cst_83 = arith.constant 1.000000e+00 : f32
    %451 = vector.broadcast %cst_83 : f32 to vector<2x16xf32>
    %452 = arith.addf %451, %450 : vector<2x16xf32>
    %453 = arith.divf %451, %452 : vector<2x16xf32>
    %454 = vector.extract_strided_slice %435 {offsets = [0, 32], sizes = [2, 16], strides = [1, 1]} : vector<2x48xf32> to vector<2x16xf32>
    %455 = vector.extract_strided_slice %436 {offsets = [0, 32], sizes = [2, 16], strides = [1, 1]} : vector<2x48xf32> to vector<2x16xf32>
    %456 = arith.mulf %445, %455 : vector<2x16xf32>
    %457 = arith.addf %454, %456 : vector<2x16xf32>
    %458 = math.tanh %457 : vector<2x16xf32>
    %cst_84 = arith.constant 1.000000e+00 : f32
    %459 = vector.broadcast %cst_84 : f32 to vector<2x16xf32>
    %460 = arith.subf %459, %453 : vector<2x16xf32>
    %461 = arith.mulf %460, %458 : vector<2x16xf32>
    %462 = arith.mulf %453, %437 : vector<2x16xf32>
    %463 = arith.addf %461, %462 : vector<2x16xf32>
    %464 = vector.extract_strided_slice %7 {offsets = [0, 1, 48], sizes = [2, 1, 48], strides = [1, 1, 1]} : vector<2x8x96xf32> to vector<2x1x48xf32>
    %465 = vector.shape_cast %464 : vector<2x1x48xf32> to vector<2x48xf32>
    %466 = vector.extract_strided_slice %433 {offsets = [0, 48], sizes = [2, 48], strides = [1, 1]} : vector<2x96xf32> to vector<2x48xf32>
    %467 = vector.extract_strided_slice %424 {offsets = [0, 16], sizes = [2, 16], strides = [1, 1]} : vector<2x32xf32> to vector<2x16xf32>
    %468 = vector.extract_strided_slice %465 {offsets = [0, 0], sizes = [2, 16], strides = [1, 1]} : vector<2x48xf32> to vector<2x16xf32>
    %469 = vector.extract_strided_slice %466 {offsets = [0, 0], sizes = [2, 16], strides = [1, 1]} : vector<2x48xf32> to vector<2x16xf32>
    %470 = arith.addf %468, %469 : vector<2x16xf32>
    %471 = arith.negf %470 : vector<2x16xf32>
    %472 = math.exp %471 : vector<2x16xf32>
    %cst_85 = arith.constant 1.000000e+00 : f32
    %473 = vector.broadcast %cst_85 : f32 to vector<2x16xf32>
    %474 = arith.addf %473, %472 : vector<2x16xf32>
    %475 = arith.divf %473, %474 : vector<2x16xf32>
    %476 = vector.extract_strided_slice %465 {offsets = [0, 16], sizes = [2, 16], strides = [1, 1]} : vector<2x48xf32> to vector<2x16xf32>
    %477 = vector.extract_strided_slice %466 {offsets = [0, 16], sizes = [2, 16], strides = [1, 1]} : vector<2x48xf32> to vector<2x16xf32>
    %478 = arith.addf %476, %477 : vector<2x16xf32>
    %479 = arith.negf %478 : vector<2x16xf32>
    %480 = math.exp %479 : vector<2x16xf32>
    %cst_86 = arith.constant 1.000000e+00 : f32
    %481 = vector.broadcast %cst_86 : f32 to vector<2x16xf32>
    %482 = arith.addf %481, %480 : vector<2x16xf32>
    %483 = arith.divf %481, %482 : vector<2x16xf32>
    %484 = vector.extract_strided_slice %465 {offsets = [0, 32], sizes = [2, 16], strides = [1, 1]} : vector<2x48xf32> to vector<2x16xf32>
    %485 = vector.extract_strided_slice %466 {offsets = [0, 32], sizes = [2, 16], strides = [1, 1]} : vector<2x48xf32> to vector<2x16xf32>
    %486 = arith.mulf %475, %485 : vector<2x16xf32>
    %487 = arith.addf %484, %486 : vector<2x16xf32>
    %488 = math.tanh %487 : vector<2x16xf32>
    %cst_87 = arith.constant 1.000000e+00 : f32
    %489 = vector.broadcast %cst_87 : f32 to vector<2x16xf32>
    %490 = arith.subf %489, %483 : vector<2x16xf32>
    %491 = arith.mulf %490, %488 : vector<2x16xf32>
    %492 = arith.mulf %483, %467 : vector<2x16xf32>
    %493 = arith.addf %491, %492 : vector<2x16xf32>
    %494 = tpu.concatenate %463, %493 in 1 : vector<2x16xf32>, vector<2x16xf32> -> vector<2x32xf32>
    %c0_88 = arith.constant 0 : index
    %c6_89 = arith.constant 6 : index
    %c0_90 = arith.constant 0 : index
    %495 = vector.load %arg5[%c0_88, %c6_89, %c0_90] : memref<2x8x32xf32, #tpu.memory_space<vmem>>, vector<2x1x16xf32>
    %496 = vector.shape_cast %495 : vector<2x1x16xf32> to vector<2x16xf32>
    %497 = vector.shape_cast %463 : vector<2x16xf32> to vector<2x1x16xf32>
    tpu.vector_store %arg5[%c0_88, %c6_89, %c0_90], %497 {strides = array<i32>} : memref<2x8x32xf32, #tpu.memory_space<vmem>>, vector<2x1x16xf32>,
    %c0_91 = arith.constant 0 : index
    %c1_92 = arith.constant 1 : index
    %c16_93 = arith.constant 16 : index
    %498 = vector.load %arg5[%c0_91, %c1_92, %c16_93] : memref<2x8x32xf32, #tpu.memory_space<vmem>>, vector<2x1x16xf32>
    %499 = vector.shape_cast %498 : vector<2x1x16xf32> to vector<2x16xf32>
    %500 = vector.shape_cast %493 : vector<2x16xf32> to vector<2x1x16xf32>
    tpu.vector_store %arg5[%c0_91, %c1_92, %c16_93], %500 {strides = array<i32>} : memref<2x8x32xf32, #tpu.memory_space<vmem>>, vector<2x1x16xf32>,
    %cst_94 = arith.constant dense<0.000000e+00> : vector<2x96xf32>
    %501 = tpu.matmul %494, %8, %cst_94 {dimension_numbers = #tpu.dot_dimension_numbers<[1], [0], [0], [1], [0, 0, 1, 1], [], []>} : vector<2x32xf32>, vector<32x96xf32>, vector<2x96xf32> -> vector<2x96xf32>
    %502 = vector.broadcast %9 : vector<1x96xf32> to vector<2x96xf32>
    %503 = arith.addf %501, %502 : vector<2x96xf32>
    %504 = vector.extract_strided_slice %7 {offsets = [0, 7, 0], sizes = [2, 1, 48], strides = [1, 1, 1]} : vector<2x8x96xf32> to vector<2x1x48xf32>
    %505 = vector.shape_cast %504 : vector<2x1x48xf32> to vector<2x48xf32>
    %506 = vector.extract_strided_slice %503 {offsets = [0, 0], sizes = [2, 48], strides = [1, 1]} : vector<2x96xf32> to vector<2x48xf32>
    %507 = vector.extract_strided_slice %494 {offsets = [0, 0], sizes = [2, 16], strides = [1, 1]} : vector<2x32xf32> to vector<2x16xf32>
    %508 = vector.extract_strided_slice %505 {offsets = [0, 0], sizes = [2, 16], strides = [1, 1]} : vector<2x48xf32> to vector<2x16xf32>
    %509 = vector.extract_strided_slice %506 {offsets = [0, 0], sizes = [2, 16], strides = [1, 1]} : vector<2x48xf32> to vector<2x16xf32>
    %510 = arith.addf %508, %509 : vector<2x16xf32>
    %511 = arith.negf %510 : vector<2x16xf32>
    %512 = math.exp %511 : vector<2x16xf32>
    %cst_95 = arith.constant 1.000000e+00 : f32
    %513 = vector.broadcast %cst_95 : f32 to vector<2x16xf32>
    %514 = arith.addf %513, %512 : vector<2x16xf32>
    %515 = arith.divf %513, %514 : vector<2x16xf32>
    %516 = vector.extract_strided_slice %505 {offsets = [0, 16], sizes = [2, 16], strides = [1, 1]} : vector<2x48xf32> to vector<2x16xf32>
    %517 = vector.extract_strided_slice %506 {offsets = [0, 16], sizes = [2, 16], strides = [1, 1]} : vector<2x48xf32> to vector<2x16xf32>
    %518 = arith.addf %516, %517 : vector<2x16xf32>
    %519 = arith.negf %518 : vector<2x16xf32>
    %520 = math.exp %519 : vector<2x16xf32>
    %cst_96 = arith.constant 1.000000e+00 : f32
    %521 = vector.broadcast %cst_96 : f32 to vector<2x16xf32>
    %522 = arith.addf %521, %520 : vector<2x16xf32>
    %523 = arith.divf %521, %522 : vector<2x16xf32>
    %524 = vector.extract_strided_slice %505 {offsets = [0, 32], sizes = [2, 16], strides = [1, 1]} : vector<2x48xf32> to vector<2x16xf32>
    %525 = vector.extract_strided_slice %506 {offsets = [0, 32], sizes = [2, 16], strides = [1, 1]} : vector<2x48xf32> to vector<2x16xf32>
    %526 = arith.mulf %515, %525 : vector<2x16xf32>
    %527 = arith.addf %524, %526 : vector<2x16xf32>
    %528 = math.tanh %527 : vector<2x16xf32>
    %cst_97 = arith.constant 1.000000e+00 : f32
    %529 = vector.broadcast %cst_97 : f32 to vector<2x16xf32>
    %530 = arith.subf %529, %523 : vector<2x16xf32>
    %531 = arith.mulf %530, %528 : vector<2x16xf32>
    %532 = arith.mulf %523, %507 : vector<2x16xf32>
    %533 = arith.addf %531, %532 : vector<2x16xf32>
    %534 = vector.extract_strided_slice %7 {offsets = [0, 0, 48], sizes = [2, 1, 48], strides = [1, 1, 1]} : vector<2x8x96xf32> to vector<2x1x48xf32>
    %535 = vector.shape_cast %534 : vector<2x1x48xf32> to vector<2x48xf32>
    %536 = vector.extract_strided_slice %503 {offsets = [0, 48], sizes = [2, 48], strides = [1, 1]} : vector<2x96xf32> to vector<2x48xf32>
    %537 = vector.extract_strided_slice %494 {offsets = [0, 16], sizes = [2, 16], strides = [1, 1]} : vector<2x32xf32> to vector<2x16xf32>
    %538 = vector.extract_strided_slice %535 {offsets = [0, 0], sizes = [2, 16], strides = [1, 1]} : vector<2x48xf32> to vector<2x16xf32>
    %539 = vector.extract_strided_slice %536 {offsets = [0, 0], sizes = [2, 16], strides = [1, 1]} : vector<2x48xf32> to vector<2x16xf32>
    %540 = arith.addf %538, %539 : vector<2x16xf32>
    %541 = arith.negf %540 : vector<2x16xf32>
    %542 = math.exp %541 : vector<2x16xf32>
    %cst_98 = arith.constant 1.000000e+00 : f32
    %543 = vector.broadcast %cst_98 : f32 to vector<2x16xf32>
    %544 = arith.addf %543, %542 : vector<2x16xf32>
    %545 = arith.divf %543, %544 : vector<2x16xf32>
    %546 = vector.extract_strided_slice %535 {offsets = [0, 16], sizes = [2, 16], strides = [1, 1]} : vector<2x48xf32> to vector<2x16xf32>
    %547 = vector.extract_strided_slice %536 {offsets = [0, 16], sizes = [2, 16], strides = [1, 1]} : vector<2x48xf32> to vector<2x16xf32>
    %548 = arith.addf %546, %547 : vector<2x16xf32>
    %549 = arith.negf %548 : vector<2x16xf32>
    %550 = math.exp %549 : vector<2x16xf32>
    %cst_99 = arith.constant 1.000000e+00 : f32
    %551 = vector.broadcast %cst_99 : f32 to vector<2x16xf32>
    %552 = arith.addf %551, %550 : vector<2x16xf32>
    %553 = arith.divf %551, %552 : vector<2x16xf32>
    %554 = vector.extract_strided_slice %535 {offsets = [0, 32], sizes = [2, 16], strides = [1, 1]} : vector<2x48xf32> to vector<2x16xf32>
    %555 = vector.extract_strided_slice %536 {offsets = [0, 32], sizes = [2, 16], strides = [1, 1]} : vector<2x48xf32> to vector<2x16xf32>
    %556 = arith.mulf %545, %555 : vector<2x16xf32>
    %557 = arith.addf %554, %556 : vector<2x16xf32>
    %558 = math.tanh %557 : vector<2x16xf32>
    %cst_100 = arith.constant 1.000000e+00 : f32
    %559 = vector.broadcast %cst_100 : f32 to vector<2x16xf32>
    %560 = arith.subf %559, %553 : vector<2x16xf32>
    %561 = arith.mulf %560, %558 : vector<2x16xf32>
    %562 = arith.mulf %553, %537 : vector<2x16xf32>
    %563 = arith.addf %561, %562 : vector<2x16xf32>
    %564 = tpu.concatenate %533, %563 in 1 : vector<2x16xf32>, vector<2x16xf32> -> vector<2x32xf32>
    %c0_101 = arith.constant 0 : index
    %c7_102 = arith.constant 7 : index
    %c0_103 = arith.constant 0 : index
    %565 = vector.load %arg5[%c0_101, %c7_102, %c0_103] : memref<2x8x32xf32, #tpu.memory_space<vmem>>, vector<2x1x16xf32>
    %566 = vector.shape_cast %565 : vector<2x1x16xf32> to vector<2x16xf32>
    %567 = vector.shape_cast %533 : vector<2x16xf32> to vector<2x1x16xf32>
    tpu.vector_store %arg5[%c0_101, %c7_102, %c0_103], %567 {strides = array<i32>} : memref<2x8x32xf32, #tpu.memory_space<vmem>>, vector<2x1x16xf32>,
    %c0_104 = arith.constant 0 : index
    %c0_105 = arith.constant 0 : index
    %c16_106 = arith.constant 16 : index
    %568 = vector.load %arg5[%c0_104, %c0_105, %c16_106] : memref<2x8x32xf32, #tpu.memory_space<vmem>>, vector<2x1x16xf32>
    %569 = vector.shape_cast %568 : vector<2x1x16xf32> to vector<2x16xf32>
    %570 = vector.shape_cast %563 : vector<2x16xf32> to vector<2x1x16xf32>
    tpu.vector_store %arg5[%c0_104, %c0_105, %c16_106], %570 {strides = array<i32>} : memref<2x8x32xf32, #tpu.memory_space<vmem>>, vector<2x1x16xf32>,
    %c0_107 = arith.constant 0 : index
    %c0_108 = arith.constant 0 : index
    %571 = vector.load %arg6[%c0_107, %c0_108] : memref<2x32xf32, #tpu.memory_space<vmem>>, vector<2x32xf32>
    tpu.vector_store %arg6[%c0_107, %c0_108], %564 {strides = array<i32>} : memref<2x32xf32, #tpu.memory_space<vmem>>, vector<2x32xf32>,
    return
  }
}

</mosaic_0001>

<llo_original>
// kernel: gru_encoder_forward.1
$region0: #{gru_encoder_forward.1}
  #allocation0 [shape = 'u32[]', space=smem, size = 0x4, offset = 0x4, fixed_abs, tag = 'smem constant byte address 0x4 - core index']
  #allocation1 [shape = 'u32[72,128]{1,0:T(1,128)}', space=vmem, size = 0x9000, scoped, tag = 'internal scratch']
  %s0 = inlined_call_operand.vmem [shape: f32[2,8,16], index: 0, kind: input, shape index: {}]
  %s1 = inlined_call_operand.vmem [shape: f32[16,96], index: 1, kind: input, shape index: {}]
  %s2 = inlined_call_operand.vmem [shape: f32[32,96], index: 2, kind: input, shape index: {}]
  %s3 = inlined_call_operand.vmem [shape: f32[1,96], index: 3, kind: input, shape index: {}]
  %s4 = inlined_call_operand.vmem [shape: f32[1,96], index: 4, kind: input, shape index: {}]
  %s5 = inlined_call_operand.hbm [shape: f32[2,8,32], index: 5, kind: output, shape index: {0}]
  %s6 = inlined_call_operand.hbm [shape: f32[2,32], index: 6, kind: output, shape index: {1}]
  %7 = xla_tuple %s5, %s6
  %s8 = sld [smem:[#allocation0]]
  $region38: #{gru_encoder_forward.1} parent=0
    _
  %s10 = ssub.s32 1, %s8
  %s11 = scalar_select 0, %s10, %s8
  $region1: #{gru_encoder_forward.1} parent=0
    #allocation2 [shape = 'u8[8192]{0}', space=vmem, size = 0x2000, scoped, tag = 'output window, operand 0, single buffered']
    #allocation3 [shape = 's32[1]{0}', space=sflag, size = 0x4, scoped, tag = 'scoped memory for gru_encoder_forward.1']
    #allocation4 [shape = 'u8[1024]{0}', space=vmem, size = 0x400, scoped, tag = 'output window, operand 1, single buffered']
    #allocation5 [shape = 's32[1]{0}', space=sflag, size = 0x4, scoped, tag = 'scoped memory for gru_encoder_forward.1']
    %12 = vsyncpa [#allocation3], 0
    %13 = vsyncpa [#allocation5], 0
    // Predicated region
    $region2: #{gru_encoder_forward.1} parent=1 // pred_check
      _
    $region3: #{gru_encoder_forward.1} parent=1 // pred_check_branch
      %15 = sbr.rel (0) target = $region5
    $region4: #{gru_encoder_forward.1} parent=1 // pred_region
      _
    $region5: #{gru_encoder_forward.1} parent=1 // pred_fallthru
      _
    // Predicated region
    $region6: #{gru_encoder_forward.1} parent=1 // pred_check
      _
    $region7: #{gru_encoder_forward.1} parent=1 // pred_check_branch
      %17 = sbr.rel (0) target = $region9
    $region8: #{gru_encoder_forward.1} parent=1 // pred_region
      _
    $region9: #{gru_encoder_forward.1} parent=1 // pred_fallthru
      _
    // Predicated region
    $region10: #{gru_encoder_forward.1} parent=1 // pred_check
      _
    $region11: #{gru_encoder_forward.1} parent=1 // pred_check_branch
      %19 = sbr.rel (0) target = $region13
    $region12: #{gru_encoder_forward.1} parent=1 // pred_region
      _
    $region13: #{gru_encoder_forward.1} parent=1 // pred_fallthru
      _
    // Predicated region
    $region14: #{gru_encoder_forward.1} parent=1 // pred_check
      _
    $region15: #{gru_encoder_forward.1} parent=1 // pred_check_branch
      %21 = sbr.rel (0) target = $region17
    $region16: #{gru_encoder_forward.1} parent=1 // pred_region
      _
    $region17: #{gru_encoder_forward.1} parent=1 // pred_fallthru
      _
    // Predicated region
    $region18: #{gru_encoder_forward.1} parent=1 // pred_check
      _
    $region19: #{gru_encoder_forward.1} parent=1 // pred_check_branch
      %23 = sbr.rel (0) target = $region21
    $region20: #{gru_encoder_forward.1} parent=1 // pred_region
      _
    $region21: #{gru_encoder_forward.1} parent=1 // pred_fallthru
      _
    %v24 = vld [vmem:[%s0] sm:$0xff]
    %v25 = vld [vmem:[%s0 + $0x8] sm:$0xff]
    %v26 = vld [vmem:[%s1] sm:$0xff]
    %v27 = vld [vmem:[%s1 + $0x8] sm:$0xff]
    %v28 = vld [vmem:[%s3] sm:$0x1]
    %v30 = vperm.slane %v28, 0
    %vm32 = vcmask 130048
    %v34 = vsel %vm32, %v24, 0
    %v37 = vsel %vm32, %v25, 0
    %39 = vmatpush.msra.mxu0 0.0
    %40 = vmatpush.msra.mxu0 0.0
    %41 = vmatpush.msra.mxu0 0.0
    %42 = vmatpush.msra.mxu0 0.0
    %43 = vmatpush.msra.mxu0 0.0
    %44 = vmatpush.msra.mxu0 0.0
    %45 = vmatpush.msra.mxu0 0.0
    %46 = vmatpush.msra.mxu0 0.0
    %47 = vmatpush.msra.mxu0 0.0
    %48 = vmatpush.msra.mxu0 0.0
    %49 = vmatpush.msra.mxu0 0.0
    %50 = vmatpush.msra.mxu0 0.0
    %51 = vmatpush.msra.mxu0 0.0
    %52 = vmatpush.msra.mxu0 0.0
    %53 = vmatpush.msra.mxu0 %v27
    %54 = vmatpush.msra.mxu0 %v26
    %55 = vmatmul.f32.gmra.mxu0 %v34
    %v56 = vpop.f32.mrf.mxu0
    %v57 = vadd.f32 %v30, %v56
    %58 = vmatmul.f32.gmra.mxu0 %v37
    %v59 = vpop.f32.mrf.mxu0
    %v60 = vadd.f32 %v30, %v59
    %61 = vdwg.mxu0
    %v62 = vld [vmem:[%s2] sm:$0xff]
    %v63 = vld [vmem:[%s2 + $0x8] sm:$0xff]
    %v64 = vld [vmem:[%s2 + $0x10] sm:$0xff]
    %v65 = vld [vmem:[%s2 + $0x18] sm:$0xff]
    %v66 = vld [vmem:[%s4] sm:$0x1]
    %v68 = vperm.slane %v66, 0
    %vm70 = vcmask 261120
    %v72 = vsel %vm70, 0.0, 0
    %74 = vmatpush.msra.mxu0 0.0
    %75 = vmatpush.msra.mxu0 0.0
    %76 = vmatpush.msra.mxu0 0.0
    %77 = vmatpush.msra.mxu0 0.0
    %78 = vmatpush.msra.mxu0 0.0
    %79 = vmatpush.msra.mxu0 0.0
    %80 = vmatpush.msra.mxu0 0.0
    %81 = vmatpush.msra.mxu0 0.0
    %82 = vmatpush.msra.mxu0 0.0
    %83 = vmatpush.msra.mxu0 0.0
    %84 = vmatpush.msra.mxu0 0.0
    %85 = vmatpush.msra.mxu0 0.0
    %86 = vmatpush.msra.mxu0 %v65
    %87 = vmatpush.msra.mxu0 %v64
    %88 = vmatpush.msra.mxu0 %v63
    %89 = vmatpush.msra.mxu0 %v62
    %90 = vmatmul.f32.gmra.mxu0 %v72
    %v91 = vpop.f32.mrf.mxu0
    %v92 = vadd.f32 %v68, %v91
    %93 = vdwg.mxu0
    %v95 = vrot.slane %v92, 1
    %v98 = vadd.f32 %v57, %v92
    %v99 = vadd.f32 %v60, %v95
    %v100 = vxor.u32 %v98, 2147483648
    %v101 = vxor.u32 %v99, 2147483648
    %v102 = vmul.f32 %v100, 1.442695
    %v103 = vpow.pop %v102
    %v104 = vmul.f32 %v101, 1.442695
    %v105 = vpow.pop %v104
    %v106 = vadd.f32 %v103, 1.0
    %v107 = vadd.f32 %v105, 1.0
    %v108 = vrcp.pop %v106
    %v109 = vmul.f32 %v106, %v108
    %v110 = vsub.f32 1.0, %v109
    %v111 = vmul.f32 %v108, %v110
    %v112 = vadd.f32 %v108, %v111
    %vm113 = vweird.f32 %v106
    %vm114 = vweird.f32 %v108
    %vm115 = vmor %vm113, %vm114
    %v116 = vsel %vm115, %v108, %v112
    %v117 = vand.u32 2147483647, %v106
    %vm118 = vcmp.eq.f32.partialorder %v117, 8.507059e+37
    %v119 = vand.u32 %v106, 2147483648
    %v120 = vor.u32 1.1754944e-38, %v119
    %v121 = vsel %vm118, %v120, %v116
    %v122 = vmul.f32 1.0, %v121
    %v123 = vrcp.pop %v107
    %v124 = vmul.f32 %v107, %v123
    %v125 = vsub.f32 1.0, %v124
    %v126 = vmul.f32 %v123, %v125
    %v127 = vadd.f32 %v123, %v126
    %vm128 = vweird.f32 %v107
    %vm129 = vweird.f32 %v123
    %vm130 = vmor %vm128, %vm129
    %v131 = vsel %vm130, %v123, %v127
    %v132 = vand.u32 2147483647, %v107
    %vm133 = vcmp.eq.f32.partialorder %v132, 8.507059e+37
    %v134 = vand.u32 %v107, 2147483648
    %v135 = vor.u32 1.1754944e-38, %v134
    %v136 = vsel %vm133, %v135, %v131
    %v137 = vmul.f32 1.0, %v136
    %138 = vrot.lane.b32.xlu0 %v92, 96
    %v139 = vpop.permute.xlu0 %138
    %140 = vrot.lane.b32.xlu0 %v95, 96
    %v141 = vpop.permute.xlu0 %140
    %v144 = vmul.f32 %v122, %v139
    %v145 = vmul.f32 %v137, %v141
    %148 = vrot.lane.b32.xlu0 %v144, 32
    %v149 = vpop.permute.xlu0 %148
    %150 = vrot.lane.b32.xlu0 %v145, 32
    %v151 = vpop.permute.xlu0 %150
    %v154 = vadd.f32 %v57, %v149
    %v155 = vadd.f32 %v60, %v151
    %v156 = vtanh.pop %v154
    %v157 = vtanh.pop %v155
    %v158 = vsub.f32 1.0, %v122
    %v159 = vsub.f32 1.0, %v137
    %162 = vrot.lane.b32.xlu0 %v156, 112
    %v163 = vpop.permute.xlu0 %162
    %164 = vrot.lane.b32.xlu0 %v157, 112
    %v165 = vpop.permute.xlu0 %164
    %v168 = vmul.f32 %v158, %v163
    %v169 = vmul.f32 %v159, %v165
    %v170 = vmul.f32 %v122, 0.0
    %v171 = vmul.f32 %v137, 0.0
    %v172 = vadd.f32 %v168, %v170
    %v173 = vadd.f32 %v169, %v171
    %v174 = vrot.slane %v92, 2
    %v176 = vadd.f32 %v57, %v95
    %v177 = vadd.f32 %v60, %v174
    %v178 = vxor.u32 %v176, 2147483648
    %v179 = vxor.u32 %v177, 2147483648
    %v180 = vmul.f32 %v178, 1.442695
    %v181 = vpow.pop %v180
    %v182 = vmul.f32 %v179, 1.442695
    %v183 = vpow.pop %v182
    %v184 = vadd.f32 %v181, 1.0
    %v185 = vadd.f32 %v183, 1.0
    %v186 = vrcp.pop %v184
    %v187 = vmul.f32 %v184, %v186
    %v188 = vsub.f32 1.0, %v187
    %v189 = vmul.f32 %v186, %v188
    %v190 = vadd.f32 %v186, %v189
    %vm191 = vweird.f32 %v184
    %vm192 = vweird.f32 %v186
    %vm193 = vmor %vm191, %vm192
    %v194 = vsel %vm193, %v186, %v190
    %v195 = vand.u32 2147483647, %v184
    %vm196 = vcmp.eq.f32.partialorder %v195, 8.507059e+37
    %v197 = vand.u32 %v184, 2147483648
    %v198 = vor.u32 1.1754944e-38, %v197
    %v199 = vsel %vm196, %v198, %v194
    %v200 = vmul.f32 1.0, %v199
    %v201 = vrcp.pop %v185
    %v202 = vmul.f32 %v185, %v201
    %v203 = vsub.f32 1.0, %v202
    %v204 = vmul.f32 %v201, %v203
    %v205 = vadd.f32 %v201, %v204
    %vm206 = vweird.f32 %v185
    %vm207 = vweird.f32 %v201
    %vm208 = vmor %vm206, %vm207
    %v209 = vsel %vm208, %v201, %v205
    %v210 = vand.u32 2147483647, %v185
    %vm211 = vcmp.eq.f32.partialorder %v210, 8.507059e+37
    %v212 = vand.u32 %v185, 2147483648
    %v213 = vor.u32 1.1754944e-38, %v212
    %v214 = vsel %vm211, %v213, %v209
    %v215 = vmul.f32 1.0, %v214
    %216 = vrot.lane.b32.xlu0 %v174, 96
    %v217 = vpop.permute.xlu0 %216
    %v219 = vmul.f32 %v200, %v141
    %v220 = vmul.f32 %v215, %v217
    %223 = vrot.lane.b32.xlu0 %v219, 32
    %v224 = vpop.permute.xlu0 %223
    %225 = vrot.lane.b32.xlu0 %v220, 32
    %v226 = vpop.permute.xlu0 %225
    %v229 = vadd.f32 %v57, %v224
    %v230 = vadd.f32 %v60, %v226
    %v231 = vtanh.pop %v229
    %v232 = vtanh.pop %v230
    %v233 = vsub.f32 1.0, %v200
    %v234 = vsub.f32 1.0, %v215
    %237 = vrot.lane.b32.xlu0 %v231, 112
    %v238 = vpop.permute.xlu0 %237
    %239 = vrot.lane.b32.xlu0 %v232, 112
    %v240 = vpop.permute.xlu0 %239
    %v243 = vmul.f32 %v233, %v238
    %v244 = vmul.f32 %v234, %v240
    %v245 = vmul.f32 %v200, 0.0
    %v246 = vmul.f32 %v215, 0.0
    %v247 = vadd.f32 %v243, %v245
    %v248 = vadd.f32 %v244, %v246
    %v251 = vrot.slane %v173, 7
    %vm252 = vcmask 1041409
    %v253 = vsel %vm252, %v251, %v172
    %254 = vrot.lane.b32.xlu0 %v253, 112
    %v255 = vpop.permute.xlu0 %254
    %v259 = vrot.slane %v247, 7
    %v260 = vrot.slane %v248, 6
    %v261 = vsel %vm252, %v260, %v259
    %262 = vrot.lane.b32.xlu0 %v261, 80
    %v263 = vpop.permute.xlu0 %262
    %v265 = vsel %vm32, %v255, %v263
    %266 = vrot.lane.b32.xlu0 %v172, 112
    %v267 = vpop.permute.xlu0 %266
    %268 = vrot.lane.b32.xlu0 %v173, 112
    %v269 = vpop.permute.xlu0 %268
    %vm272 = vcmask 122880
    %273 = vst.msk [vmem:[#allocation2] sm:$0x1] %vm272, %v267
    %274 = vst.msk [vmem:[#allocation2 + $0x8] sm:$0x1] %vm272, %v269
    %275 = vrot.lane.b32.xlu0 %v247, 80
    %v276 = vpop.permute.xlu0 %275
    %277 = vrot.lane.b32.xlu0 %v248, 80
    %v278 = vpop.permute.xlu0 %277
    %vm281 = vcmask 261255
    %282 = vst.msk [vmem:[#allocation2] sm:$0x80] %vm281, %v276
    %283 = vst.msk [vmem:[#allocation2 + $0x8] sm:$0x80] %vm281, %v278
    %v285 = vsel %vm70, %v265, 0
    %287 = vmatpush.msra.mxu0 0.0
    %288 = vmatpush.msra.mxu0 0.0
    %289 = vmatpush.msra.mxu0 0.0
    %290 = vmatpush.msra.mxu0 0.0
    %291 = vmatpush.msra.mxu0 0.0
    %292 = vmatpush.msra.mxu0 0.0
    %293 = vmatpush.msra.mxu0 0.0
    %294 = vmatpush.msra.mxu0 0.0
    %295 = vmatpush.msra.mxu0 0.0
    %296 = vmatpush.msra.mxu0 0.0
    %297 = vmatpush.msra.mxu0 0.0
    %298 = vmatpush.msra.mxu0 0.0
    %299 = vmatpush.msra.mxu0 %v65
    %300 = vmatpush.msra.mxu0 %v64
    %301 = vmatpush.msra.mxu0 %v63
    %302 = vmatpush.msra.mxu0 %v62
    %303 = vmatmul.f32.gmra.mxu0 %v285
    %v304 = vpop.f32.mrf.mxu0
    %v305 = vadd.f32 %v68, %v304
    %306 = vdwg.mxu0
    %v308 = vrot.slane %v305, 7
    %v311 = vadd.f32 %v57, %v308
    %v312 = vadd.f32 %v60, %v305
    %v313 = vxor.u32 %v311, 2147483648
    %v314 = vxor.u32 %v312, 2147483648
    %v315 = vmul.f32 %v313, 1.442695
    %v316 = vpow.pop %v315
    %v317 = vmul.f32 %v314, 1.442695
    %v318 = vpow.pop %v317
    %v319 = vadd.f32 %v316, 1.0
    %v320 = vadd.f32 %v318, 1.0
    %v321 = vrcp.pop %v319
    %v322 = vmul.f32 %v319, %v321
    %v323 = vsub.f32 1.0, %v322
    %v324 = vmul.f32 %v321, %v323
    %v325 = vadd.f32 %v321, %v324
    %vm326 = vweird.f32 %v319
    %vm327 = vweird.f32 %v321
    %vm328 = vmor %vm326, %vm327
    %v329 = vsel %vm328, %v321, %v325
    %v330 = vand.u32 2147483647, %v319
    %vm331 = vcmp.eq.f32.partialorder %v330, 8.507059e+37
    %v332 = vand.u32 %v319, 2147483648
    %v333 = vor.u32 1.1754944e-38, %v332
    %v334 = vsel %vm331, %v333, %v329
    %v335 = vmul.f32 1.0, %v334
    %v336 = vrcp.pop %v320
    %v337 = vmul.f32 %v320, %v336
    %v338 = vsub.f32 1.0, %v337
    %v339 = vmul.f32 %v336, %v338
    %v340 = vadd.f32 %v336, %v339
    %vm341 = vweird.f32 %v320
    %vm342 = vweird.f32 %v336
    %vm343 = vmor %vm341, %vm342
    %v344 = vsel %vm343, %v336, %v340
    %v345 = vand.u32 2147483647, %v320
    %vm346 = vcmp.eq.f32.partialorder %v345, 8.507059e+37
    %v347 = vand.u32 %v320, 2147483648
    %v348 = vor.u32 1.1754944e-38, %v347
    %v349 = vsel %vm346, %v348, %v344
    %v350 = vmul.f32 1.0, %v349
    %351 = vrot.lane.b32.xlu0 %v308, 96
    %v352 = vpop.permute.xlu0 %351
    %353 = vrot.lane.b32.xlu0 %v305, 96
    %v354 = vpop.permute.xlu0 %353
    %v357 = vmul.f32 %v335, %v352
    %v358 = vmul.f32 %v350, %v354
    %361 = vrot.lane.b32.xlu0 %v357, 32
    %v362 = vpop.permute.xlu0 %361
    %363 = vrot.lane.b32.xlu0 %v358, 32
    %v364 = vpop.permute.xlu0 %363
    %v367 = vadd.f32 %v57, %v362
    %v368 = vadd.f32 %v60, %v364
    %v369 = vtanh.pop %v367
    %v370 = vtanh.pop %v368
    %v371 = vsub.f32 1.0, %v335
    %v372 = vsub.f32 1.0, %v350
    %375 = vrot.lane.b32.xlu0 %v369, 112
    %v376 = vpop.permute.xlu0 %375
    %377 = vrot.lane.b32.xlu0 %v370, 112
    %v378 = vpop.permute.xlu0 %377
    %v381 = vmul.f32 %v371, %v376
    %v382 = vmul.f32 %v372, %v378
    %v383 = vrot.slane %v265, 7
    %384 = vrot.lane.b32.xlu0 %v383, 16
    %v385 = vpop.permute.xlu0 %384
    %386 = vrot.lane.b32.xlu0 %v265, 16
    %v387 = vpop.permute.xlu0 %386
    %v390 = vmul.f32 %v335, %v385
    %v391 = vmul.f32 %v350, %v387
    %v392 = vadd.f32 %v381, %v390
    %v393 = vadd.f32 %v382, %v391
    %v394 = vrot.slane %v305, 2
    %v395 = vrot.slane %v305, 3
    %v398 = vadd.f32 %v57, %v394
    %v399 = vadd.f32 %v60, %v395
    %v400 = vxor.u32 %v398, 2147483648
    %v401 = vxor.u32 %v399, 2147483648
    %v402 = vmul.f32 %v400, 1.442695
    %v403 = vpow.pop %v402
    %v404 = vmul.f32 %v401, 1.442695
    %v405 = vpow.pop %v404
    %v406 = vadd.f32 %v403, 1.0
    %v407 = vadd.f32 %v405, 1.0
    %v408 = vrcp.pop %v406
    %v409 = vmul.f32 %v406, %v408
    %v410 = vsub.f32 1.0, %v409
    %v411 = vmul.f32 %v408, %v410
    %v412 = vadd.f32 %v408, %v411
    %vm413 = vweird.f32 %v406
    %vm414 = vweird.f32 %v408
    %vm415 = vmor %vm413, %vm414
    %v416 = vsel %vm415, %v408, %v412
    %v417 = vand.u32 2147483647, %v406
    %vm418 = vcmp.eq.f32.partialorder %v417, 8.507059e+37
    %v419 = vand.u32 %v406, 2147483648
    %v420 = vor.u32 1.1754944e-38, %v419
    %v421 = vsel %vm418, %v420, %v416
    %v422 = vmul.f32 1.0, %v421
    %v423 = vrcp.pop %v407
    %v424 = vmul.f32 %v407, %v423
    %v425 = vsub.f32 1.0, %v424
    %v426 = vmul.f32 %v423, %v425
    %v427 = vadd.f32 %v423, %v426
    %vm428 = vweird.f32 %v407
    %vm429 = vweird.f32 %v423
    %vm430 = vmor %vm428, %vm429
    %v431 = vsel %vm430, %v423, %v427
    %v432 = vand.u32 2147483647, %v407
    %vm433 = vcmp.eq.f32.partialorder %v432, 8.507059e+37
    %v434 = vand.u32 %v407, 2147483648
    %v435 = vor.u32 1.1754944e-38, %v434
    %v436 = vsel %vm433, %v435, %v431
    %v437 = vmul.f32 1.0, %v436
    %438 = vrot.lane.b32.xlu0 %v394, 96
    %v439 = vpop.permute.xlu0 %438
    %440 = vrot.lane.b32.xlu0 %v395, 96
    %v441 = vpop.permute.xlu0 %440
    %v444 = vmul.f32 %v422, %v439
    %v445 = vmul.f32 %v437, %v441
    %448 = vrot.lane.b32.xlu0 %v444, 32
    %v449 = vpop.permute.xlu0 %448
    %450 = vrot.lane.b32.xlu0 %v445, 32
    %v451 = vpop.permute.xlu0 %450
    %v454 = vadd.f32 %v57, %v449
    %v455 = vadd.f32 %v60, %v451
    %v456 = vtanh.pop %v454
    %v457 = vtanh.pop %v455
    %v458 = vsub.f32 1.0, %v422
    %v459 = vsub.f32 1.0, %v437
    %462 = vrot.lane.b32.xlu0 %v456, 112
    %v463 = vpop.permute.xlu0 %462
    %464 = vrot.lane.b32.xlu0 %v457, 112
    %v465 = vpop.permute.xlu0 %464
    %v468 = vmul.f32 %v458, %v463
    %v469 = vmul.f32 %v459, %v465
    %v470 = vrot.slane %v265, 2
    %v471 = vrot.slane %v265, 3
    %472 = vrot.lane.b32.xlu0 %v470, 48
    %v473 = vpop.permute.xlu0 %472
    %474 = vrot.lane.b32.xlu0 %v471, 48
    %v475 = vpop.permute.xlu0 %474
    %v478 = vmul.f32 %v422, %v473
    %v479 = vmul.f32 %v437, %v475
    %v480 = vadd.f32 %v468, %v478
    %v481 = vadd.f32 %v469, %v479
    %v484 = vrot.slane %v393, 7
    %vm485 = vcmask 1042434
    %v486 = vsel %vm485, %v484, %v392
    %487 = vrot.lane.b32.xlu0 %v486, 112
    %v488 = vpop.permute.xlu0 %487
    %v492 = vrot.slane %v480, 5
    %v493 = vrot.slane %v481, 4
    %v494 = vsel %vm485, %v493, %v492
    %495 = vrot.lane.b32.xlu0 %v494, 80
    %v496 = vpop.permute.xlu0 %495
    %v498 = vsel %vm32, %v488, %v496
    %499 = vrot.lane.b32.xlu0 %v392, 112
    %v500 = vpop.permute.xlu0 %499
    %501 = vrot.lane.b32.xlu0 %v393, 112
    %v502 = vpop.permute.xlu0 %501
    %vm505 = vcmask 123905
    %506 = vst.msk [vmem:[#allocation2] sm:$0x2] %vm505, %v500
    %507 = vst.msk [vmem:[#allocation2 + $0x8] sm:$0x2] %vm505, %v502
    %508 = vrot.lane.b32.xlu0 %v480, 80
    %v509 = vpop.permute.xlu0 %508
    %510 = vrot.lane.b32.xlu0 %v481, 80
    %v511 = vpop.permute.xlu0 %510
    %vm514 = vcmask 260230
    %515 = vst.msk [vmem:[#allocation2] sm:$0x40] %vm514, %v509
    %516 = vst.msk [vmem:[#allocation2 + $0x8] sm:$0x40] %vm514, %v511
    %v518 = vrot.slane %v498, 1
    %v519 = vsel %vm70, %v518, 0
    %521 = vmatpush.msra.mxu0 0.0
    %522 = vmatpush.msra.mxu0 0.0
    %523 = vmatpush.msra.mxu0 0.0
    %524 = vmatpush.msra.mxu0 0.0
    %525 = vmatpush.msra.mxu0 0.0
    %526 = vmatpush.msra.mxu0 0.0
    %527 = vmatpush.msra.mxu0 0.0
    %528 = vmatpush.msra.mxu0 0.0
    %529 = vmatpush.msra.mxu0 0.0
    %530 = vmatpush.msra.mxu0 0.0
    %531 = vmatpush.msra.mxu0 0.0
    %532 = vmatpush.msra.mxu0 0.0
    %533 = vmatpush.msra.mxu0 %v65
    %534 = vmatpush.msra.mxu0 %v64
    %535 = vmatpush.msra.mxu0 %v63
    %536 = vmatpush.msra.mxu0 %v62
    %537 = vmatmul.f32.gmra.mxu0 %v519
    %v538 = vpop.f32.mrf.mxu0
    %v539 = vadd.f32 %v68, %v538
    %540 = vdwg.mxu0
    %v542 = vrot.slane %v539, 6
    %v543 = vrot.slane %v539, 7
    %v546 = vadd.f32 %v57, %v542
    %v547 = vadd.f32 %v60, %v543
    %v548 = vxor.u32 %v546, 2147483648
    %v549 = vxor.u32 %v547, 2147483648
    %v550 = vmul.f32 %v548, 1.442695
    %v551 = vpow.pop %v550
    %v552 = vmul.f32 %v549, 1.442695
    %v553 = vpow.pop %v552
    %v554 = vadd.f32 %v551, 1.0
    %v555 = vadd.f32 %v553, 1.0
    %v556 = vrcp.pop %v554
    %v557 = vmul.f32 %v554, %v556
    %v558 = vsub.f32 1.0, %v557
    %v559 = vmul.f32 %v556, %v558
    %v560 = vadd.f32 %v556, %v559
    %vm561 = vweird.f32 %v554
    %vm562 = vweird.f32 %v556
    %vm563 = vmor %vm561, %vm562
    %v564 = vsel %vm563, %v556, %v560
    %v565 = vand.u32 2147483647, %v554
    %vm566 = vcmp.eq.f32.partialorder %v565, 8.507059e+37
    %v567 = vand.u32 %v554, 2147483648
    %v568 = vor.u32 1.1754944e-38, %v567
    %v569 = vsel %vm566, %v568, %v564
    %v570 = vmul.f32 1.0, %v569
    %v571 = vrcp.pop %v555
    %v572 = vmul.f32 %v555, %v571
    %v573 = vsub.f32 1.0, %v572
    %v574 = vmul.f32 %v571, %v573
    %v575 = vadd.f32 %v571, %v574
    %vm576 = vweird.f32 %v555
    %vm577 = vweird.f32 %v571
    %vm578 = vmor %vm576, %vm577
    %v579 = vsel %vm578, %v571, %v575
    %v580 = vand.u32 2147483647, %v555
    %vm581 = vcmp.eq.f32.partialorder %v580, 8.507059e+37
    %v582 = vand.u32 %v555, 2147483648
    %v583 = vor.u32 1.1754944e-38, %v582
    %v584 = vsel %vm581, %v583, %v579
    %v585 = vmul.f32 1.0, %v584
    %586 = vrot.lane.b32.xlu0 %v542, 96
    %v587 = vpop.permute.xlu0 %586
    %588 = vrot.lane.b32.xlu0 %v543, 96
    %v589 = vpop.permute.xlu0 %588
    %v592 = vmul.f32 %v570, %v587
    %v593 = vmul.f32 %v585, %v589
    %596 = vrot.lane.b32.xlu0 %v592, 32
    %v597 = vpop.permute.xlu0 %596
    %598 = vrot.lane.b32.xlu0 %v593, 32
    %v599 = vpop.permute.xlu0 %598
    %v602 = vadd.f32 %v57, %v597
    %v603 = vadd.f32 %v60, %v599
    %v604 = vtanh.pop %v602
    %v605 = vtanh.pop %v603
    %v606 = vsub.f32 1.0, %v570
    %v607 = vsub.f32 1.0, %v585
    %610 = vrot.lane.b32.xlu0 %v604, 112
    %v611 = vpop.permute.xlu0 %610
    %612 = vrot.lane.b32.xlu0 %v605, 112
    %v613 = vpop.permute.xlu0 %612
    %v616 = vmul.f32 %v606, %v611
    %v617 = vmul.f32 %v607, %v613
    %v618 = vrot.slane %v498, 7
    %619 = vrot.lane.b32.xlu0 %v618, 16
    %v620 = vpop.permute.xlu0 %619
    %621 = vrot.lane.b32.xlu0 %v498, 16
    %v622 = vpop.permute.xlu0 %621
    %v625 = vmul.f32 %v570, %v620
    %v626 = vmul.f32 %v585, %v622
    %v627 = vadd.f32 %v616, %v625
    %v628 = vadd.f32 %v617, %v626
    %v629 = vrot.slane %v539, 3
    %v630 = vrot.slane %v539, 4
    %v633 = vadd.f32 %v57, %v629
    %v634 = vadd.f32 %v60, %v630
    %v635 = vxor.u32 %v633, 2147483648
    %v636 = vxor.u32 %v634, 2147483648
    %v637 = vmul.f32 %v635, 1.442695
    %v638 = vpow.pop %v637
    %v639 = vmul.f32 %v636, 1.442695
    %v640 = vpow.pop %v639
    %v641 = vadd.f32 %v638, 1.0
    %v642 = vadd.f32 %v640, 1.0
    %v643 = vrcp.pop %v641
    %v644 = vmul.f32 %v641, %v643
    %v645 = vsub.f32 1.0, %v644
    %v646 = vmul.f32 %v643, %v645
    %v647 = vadd.f32 %v643, %v646
    %vm648 = vweird.f32 %v641
    %vm649 = vweird.f32 %v643
    %vm650 = vmor %vm648, %vm649
    %v651 = vsel %vm650, %v643, %v647
    %v652 = vand.u32 2147483647, %v641
    %vm653 = vcmp.eq.f32.partialorder %v652, 8.507059e+37
    %v654 = vand.u32 %v641, 2147483648
    %v655 = vor.u32 1.1754944e-38, %v654
    %v656 = vsel %vm653, %v655, %v651
    %v657 = vmul.f32 1.0, %v656
    %v658 = vrcp.pop %v642
    %v659 = vmul.f32 %v642, %v658
    %v660 = vsub.f32 1.0, %v659
    %v661 = vmul.f32 %v658, %v660
    %v662 = vadd.f32 %v658, %v661
    %vm663 = vweird.f32 %v642
    %vm664 = vweird.f32 %v658
    %vm665 = vmor %vm663, %vm664
    %v666 = vsel %vm665, %v658, %v662
    %v667 = vand.u32 2147483647, %v642
    %vm668 = vcmp.eq.f32.partialorder %v667, 8.507059e+37
    %v669 = vand.u32 %v642, 2147483648
    %v670 = vor.u32 1.1754944e-38, %v669
    %v671 = vsel %vm668, %v670, %v666
    %v672 = vmul.f32 1.0, %v671
    %673 = vrot.lane.b32.xlu0 %v629, 96
    %v674 = vpop.permute.xlu0 %673
    %675 = vrot.lane.b32.xlu0 %v630, 96
    %v676 = vpop.permute.xlu0 %675
    %v679 = vmul.f32 %v657, %v674
    %v680 = vmul.f32 %v672, %v676
    %683 = vrot.lane.b32.xlu0 %v679, 32
    %v684 = vpop.permute.xlu0 %683
    %685 = vrot.lane.b32.xlu0 %v680, 32
    %v686 = vpop.permute.xlu0 %685
    %v689 = vadd.f32 %v57, %v684
    %v690 = vadd.f32 %v60, %v686
    %v691 = vtanh.pop %v689
    %v692 = vtanh.pop %v690
    %v693 = vsub.f32 1.0, %v657
    %v694 = vsub.f32 1.0, %v672
    %697 = vrot.lane.b32.xlu0 %v691, 112
    %v698 = vpop.permute.xlu0 %697
    %699 = vrot.lane.b32.xlu0 %v692, 112
    %v700 = vpop.permute.xlu0 %699
    %v703 = vmul.f32 %v693, %v698
    %v704 = vmul.f32 %v694, %v700
    %v705 = vrot.slane %v498, 4
    %v706 = vrot.slane %v498, 5
    %707 = vrot.lane.b32.xlu0 %v705, 48
    %v708 = vpop.permute.xlu0 %707
    %709 = vrot.lane.b32.xlu0 %v706, 48
    %v710 = vpop.permute.xlu0 %709
    %v713 = vmul.f32 %v657, %v708
    %v714 = vmul.f32 %v672, %v710
    %v715 = vadd.f32 %v703, %v713
    %v716 = vadd.f32 %v704, %v714
    %v719 = vrot.slane %v628, 7
    %vm720 = vcmask 1043459
    %v721 = vsel %vm720, %v719, %v627
    %722 = vrot.lane.b32.xlu0 %v721, 112
    %v723 = vpop.permute.xlu0 %722
    %v727 = vrot.slane %v715, 3
    %v728 = vrot.slane %v716, 2
    %v729 = vsel %vm720, %v728, %v727
    %730 = vrot.lane.b32.xlu0 %v729, 80
    %v731 = vpop.permute.xlu0 %730
    %v733 = vsel %vm32, %v723, %v731
    %734 = vrot.lane.b32.xlu0 %v627, 112
    %v735 = vpop.permute.xlu0 %734
    %736 = vrot.lane.b32.xlu0 %v628, 112
    %v737 = vpop.permute.xlu0 %736
    %vm740 = vcmask 124930
    %741 = vst.msk [vmem:[#allocation2] sm:$0x4] %vm740, %v735
    %742 = vst.msk [vmem:[#allocation2 + $0x8] sm:$0x4] %vm740, %v737
    %743 = vrot.lane.b32.xlu0 %v715, 80
    %v744 = vpop.permute.xlu0 %743
    %745 = vrot.lane.b32.xlu0 %v716, 80
    %v746 = vpop.permute.xlu0 %745
    %vm749 = vcmask 259205
    %750 = vst.msk [vmem:[#allocation2] sm:$0x20] %vm749, %v744
    %751 = vst.msk [vmem:[#allocation2 + $0x8] sm:$0x20] %vm749, %v746
    %v753 = vrot.slane %v733, 2
    %v754 = vsel %vm70, %v753, 0
    %756 = vmatpush.msra.mxu0 0.0
    %757 = vmatpush.msra.mxu0 0.0
    %758 = vmatpush.msra.mxu0 0.0
    %759 = vmatpush.msra.mxu0 0.0
    %760 = vmatpush.msra.mxu0 0.0
    %761 = vmatpush.msra.mxu0 0.0
    %762 = vmatpush.msra.mxu0 0.0
    %763 = vmatpush.msra.mxu0 0.0
    %764 = vmatpush.msra.mxu0 0.0
    %765 = vmatpush.msra.mxu0 0.0
    %766 = vmatpush.msra.mxu0 0.0
    %767 = vmatpush.msra.mxu0 0.0
    %768 = vmatpush.msra.mxu0 %v65
    %769 = vmatpush.msra.mxu0 %v64
    %770 = vmatpush.msra.mxu0 %v63
    %771 = vmatpush.msra.mxu0 %v62
    %772 = vmatmul.f32.gmra.mxu0 %v754
    %v773 = vpop.f32.mrf.mxu0
    %v774 = vadd.f32 %v68, %v773
    %775 = vdwg.mxu0
    %v777 = vrot.slane %v774, 5
    %v778 = vrot.slane %v774, 6
    %v781 = vadd.f32 %v57, %v777
    %v782 = vadd.f32 %v60, %v778
    %v783 = vxor.u32 %v781, 2147483648
    %v784 = vxor.u32 %v782, 2147483648
    %v785 = vmul.f32 %v783, 1.442695
    %v786 = vpow.pop %v785
    %v787 = vmul.f32 %v784, 1.442695
    %v788 = vpow.pop %v787
    %v789 = vadd.f32 %v786, 1.0
    %v790 = vadd.f32 %v788, 1.0
    %v791 = vrcp.pop %v789
    %v792 = vmul.f32 %v789, %v791
    %v793 = vsub.f32 1.0, %v792
    %v794 = vmul.f32 %v791, %v793
    %v795 = vadd.f32 %v791, %v794
    %vm796 = vweird.f32 %v789
    %vm797 = vweird.f32 %v791
    %vm798 = vmor %vm796, %vm797
    %v799 = vsel %vm798, %v791, %v795
    %v800 = vand.u32 2147483647, %v789
    %vm801 = vcmp.eq.f32.partialorder %v800, 8.507059e+37
    %v802 = vand.u32 %v789, 2147483648
    %v803 = vor.u32 1.1754944e-38, %v802
    %v804 = vsel %vm801, %v803, %v799
    %v805 = vmul.f32 1.0, %v804
    %v806 = vrcp.pop %v790
    %v807 = vmul.f32 %v790, %v806
    %v808 = vsub.f32 1.0, %v807
    %v809 = vmul.f32 %v806, %v808
    %v810 = vadd.f32 %v806, %v809
    %vm811 = vweird.f32 %v790
    %vm812 = vweird.f32 %v806
    %vm813 = vmor %vm811, %vm812
    %v814 = vsel %vm813, %v806, %v810
    %v815 = vand.u32 2147483647, %v790
    %vm816 = vcmp.eq.f32.partialorder %v815, 8.507059e+37
    %v817 = vand.u32 %v790, 2147483648
    %v818 = vor.u32 1.1754944e-38, %v817
    %v819 = vsel %vm816, %v818, %v814
    %v820 = vmul.f32 1.0, %v819
    %821 = vrot.lane.b32.xlu0 %v777, 96
    %v822 = vpop.permute.xlu0 %821
    %823 = vrot.lane.b32.xlu0 %v778, 96
    %v824 = vpop.permute.xlu0 %823
    %v827 = vmul.f32 %v805, %v822
    %v828 = vmul.f32 %v820, %v824
    %831 = vrot.lane.b32.xlu0 %v827, 32
    %v832 = vpop.permute.xlu0 %831
    %833 = vrot.lane.b32.xlu0 %v828, 32
    %v834 = vpop.permute.xlu0 %833
    %v837 = vadd.f32 %v57, %v832
    %v838 = vadd.f32 %v60, %v834
    %v839 = vtanh.pop %v837
    %v840 = vtanh.pop %v838
    %v841 = vsub.f32 1.0, %v805
    %v842 = vsub.f32 1.0, %v820
    %845 = vrot.lane.b32.xlu0 %v839, 112
    %v846 = vpop.permute.xlu0 %845
    %847 = vrot.lane.b32.xlu0 %v840, 112
    %v848 = vpop.permute.xlu0 %847
    %v851 = vmul.f32 %v841, %v846
    %v852 = vmul.f32 %v842, %v848
    %v853 = vrot.slane %v733, 7
    %854 = vrot.lane.b32.xlu0 %v853, 16
    %v855 = vpop.permute.xlu0 %854
    %856 = vrot.lane.b32.xlu0 %v733, 16
    %v857 = vpop.permute.xlu0 %856
    %v860 = vmul.f32 %v805, %v855
    %v861 = vmul.f32 %v820, %v857
    %v862 = vadd.f32 %v851, %v860
    %v863 = vadd.f32 %v852, %v861
    %v864 = vrot.slane %v774, 4
    %v866 = vadd.f32 %v57, %v864
    %v867 = vadd.f32 %v60, %v777
    %v868 = vxor.u32 %v866, 2147483648
    %v869 = vxor.u32 %v867, 2147483648
    %v870 = vmul.f32 %v868, 1.442695
    %v871 = vpow.pop %v870
    %v872 = vmul.f32 %v869, 1.442695
    %v873 = vpow.pop %v872
    %v874 = vadd.f32 %v871, 1.0
    %v875 = vadd.f32 %v873, 1.0
    %v876 = vrcp.pop %v874
    %v877 = vmul.f32 %v874, %v876
    %v878 = vsub.f32 1.0, %v877
    %v879 = vmul.f32 %v876, %v878
    %v880 = vadd.f32 %v876, %v879
    %vm881 = vweird.f32 %v874
    %vm882 = vweird.f32 %v876
    %vm883 = vmor %vm881, %vm882
    %v884 = vsel %vm883, %v876, %v880
    %v885 = vand.u32 2147483647, %v874
    %vm886 = vcmp.eq.f32.partialorder %v885, 8.507059e+37
    %v887 = vand.u32 %v874, 2147483648
    %v888 = vor.u32 1.1754944e-38, %v887
    %v889 = vsel %vm886, %v888, %v884
    %v890 = vmul.f32 1.0, %v889
    %v891 = vrcp.pop %v875
    %v892 = vmul.f32 %v875, %v891
    %v893 = vsub.f32 1.0, %v892
    %v894 = vmul.f32 %v891, %v893
    %v895 = vadd.f32 %v891, %v894
    %vm896 = vweird.f32 %v875
    %vm897 = vweird.f32 %v891
    %vm898 = vmor %vm896, %vm897
    %v899 = vsel %vm898, %v891, %v895
    %v900 = vand.u32 2147483647, %v875
    %vm901 = vcmp.eq.f32.partialorder %v900, 8.507059e+37
    %v902 = vand.u32 %v875, 2147483648
    %v903 = vor.u32 1.1754944e-38, %v902
    %v904 = vsel %vm901, %v903, %v899
    %v905 = vmul.f32 1.0, %v904
    %906 = vrot.lane.b32.xlu0 %v864, 96
    %v907 = vpop.permute.xlu0 %906
    %v909 = vmul.f32 %v890, %v907
    %v910 = vmul.f32 %v905, %v822
    %913 = vrot.lane.b32.xlu0 %v909, 32
    %v914 = vpop.permute.xlu0 %913
    %915 = vrot.lane.b32.xlu0 %v910, 32
    %v916 = vpop.permute.xlu0 %915
    %v919 = vadd.f32 %v57, %v914
    %v920 = vadd.f32 %v60, %v916
    %v921 = vtanh.pop %v919
    %v922 = vtanh.pop %v920
    %v923 = vsub.f32 1.0, %v890
    %v924 = vsub.f32 1.0, %v905
    %927 = vrot.lane.b32.xlu0 %v921, 112
    %v928 = vpop.permute.xlu0 %927
    %929 = vrot.lane.b32.xlu0 %v922, 112
    %v930 = vpop.permute.xlu0 %929
    %v933 = vmul.f32 %v923, %v928
    %v934 = vmul.f32 %v924, %v930
    %v935 = vrot.slane %v733, 6
    %936 = vrot.lane.b32.xlu0 %v935, 48
    %v937 = vpop.permute.xlu0 %936
    %938 = vrot.lane.b32.xlu0 %v853, 48
    %v939 = vpop.permute.xlu0 %938
    %v942 = vmul.f32 %v890, %v937
    %v943 = vmul.f32 %v905, %v939
    %v944 = vadd.f32 %v933, %v942
    %v945 = vadd.f32 %v934, %v943
    %v948 = vrot.slane %v863, 7
    %vm949 = vcmask 1044484
    %v950 = vsel %vm949, %v948, %v862
    %951 = vrot.lane.b32.xlu0 %v950, 112
    %v952 = vpop.permute.xlu0 %951
    %v956 = vrot.slane %v944, 1
    %v957 = vsel %vm949, %v945, %v956
    %958 = vrot.lane.b32.xlu0 %v957, 80
    %v959 = vpop.permute.xlu0 %958
    %v961 = vsel %vm32, %v952, %v959
    %962 = vrot.lane.b32.xlu0 %v862, 112
    %v963 = vpop.permute.xlu0 %962
    %964 = vrot.lane.b32.xlu0 %v863, 112
    %v965 = vpop.permute.xlu0 %964
    %vm968 = vcmask 125955
    %969 = vst.msk [vmem:[#allocation2] sm:$0x8] %vm968, %v963
    %970 = vst.msk [vmem:[#allocation2 + $0x8] sm:$0x8] %vm968, %v965
    %971 = vrot.lane.b32.xlu0 %v944, 80
    %v972 = vpop.permute.xlu0 %971
    %973 = vrot.lane.b32.xlu0 %v945, 80
    %v974 = vpop.permute.xlu0 %973
    %vm977 = vcmask 258180
    %978 = vst.msk [vmem:[#allocation2] sm:$0x10] %vm977, %v972
    %979 = vst.msk [vmem:[#allocation2 + $0x8] sm:$0x10] %vm977, %v974
    %v981 = vrot.slane %v961, 3
    %v982 = vsel %vm70, %v981, 0
    %984 = vmatpush.msra.mxu0 0.0
    %985 = vmatpush.msra.mxu0 0.0
    %986 = vmatpush.msra.mxu0 0.0
    %987 = vmatpush.msra.mxu0 0.0
    %988 = vmatpush.msra.mxu0 0.0
    %989 = vmatpush.msra.mxu0 0.0
    %990 = vmatpush.msra.mxu0 0.0
    %991 = vmatpush.msra.mxu0 0.0
    %992 = vmatpush.msra.mxu0 0.0
    %993 = vmatpush.msra.mxu0 0.0
    %994 = vmatpush.msra.mxu0 0.0
    %995 = vmatpush.msra.mxu0 0.0
    %996 = vmatpush.msra.mxu0 %v65
    %997 = vmatpush.msra.mxu0 %v64
    %998 = vmatpush.msra.mxu0 %v63
    %999 = vmatpush.msra.mxu0 %v62
    %1000 = vmatmul.f32.gmra.mxu0 %v982
    %v1001 = vpop.f32.mrf.mxu0
    %v1002 = vadd.f32 %v68, %v1001
    %1003 = vdwg.mxu0
    %v1005 = vrot.slane %v1002, 4
    %v1006 = vrot.slane %v1002, 5
    %v1009 = vadd.f32 %v57, %v1005
    %v1010 = vadd.f32 %v60, %v1006
    %v1011 = vxor.u32 %v1009, 2147483648
    %v1012 = vxor.u32 %v1010, 2147483648
    %v1013 = vmul.f32 %v1011, 1.442695
    %v1014 = vpow.pop %v1013
    %v1015 = vmul.f32 %v1012, 1.442695
    %v1016 = vpow.pop %v1015
    %v1017 = vadd.f32 %v1014, 1.0
    %v1018 = vadd.f32 %v1016, 1.0
    %v1019 = vrcp.pop %v1017
    %v1020 = vmul.f32 %v1017, %v1019
    %v1021 = vsub.f32 1.0, %v1020
    %v1022 = vmul.f32 %v1019, %v1021
    %v1023 = vadd.f32 %v1019, %v1022
    %vm1024 = vweird.f32 %v1017
    %vm1025 = vweird.f32 %v1019
    %vm1026 = vmor %vm1024, %vm1025
    %v1027 = vsel %vm1026, %v1019, %v1023
    %v1028 = vand.u32 2147483647, %v1017
    %vm1029 = vcmp.eq.f32.partialorder %v1028, 8.507059e+37
    %v1030 = vand.u32 %v1017, 2147483648
    %v1031 = vor.u32 1.1754944e-38, %v1030
    %v1032 = vsel %vm1029, %v1031, %v1027
    %v1033 = vmul.f32 1.0, %v1032
    %v1034 = vrcp.pop %v1018
    %v1035 = vmul.f32 %v1018, %v1034
    %v1036 = vsub.f32 1.0, %v1035
    %v1037 = vmul.f32 %v1034, %v1036
    %v1038 = vadd.f32 %v1034, %v1037
    %vm1039 = vweird.f32 %v1018
    %vm1040 = vweird.f32 %v1034
    %vm1041 = vmor %vm1039, %vm1040
    %v1042 = vsel %vm1041, %v1034, %v1038
    %v1043 = vand.u32 2147483647, %v1018
    %vm1044 = vcmp.eq.f32.partialorder %v1043, 8.507059e+37
    %v1045 = vand.u32 %v1018, 2147483648
    %v1046 = vor.u32 1.1754944e-38, %v1045
    %v1047 = vsel %vm1044, %v1046, %v1042
    %v1048 = vmul.f32 1.0, %v1047
    %1049 = vrot.lane.b32.xlu0 %v1005, 96
    %v1050 = vpop.permute.xlu0 %1049
    %1051 = vrot.lane.b32.xlu0 %v1006, 96
    %v1052 = vpop.permute.xlu0 %1051
    %v1055 = vmul.f32 %v1033, %v1050
    %v1056 = vmul.f32 %v1048, %v1052
    %1059 = vrot.lane.b32.xlu0 %v1055, 32
    %v1060 = vpop.permute.xlu0 %1059
    %1061 = vrot.lane.b32.xlu0 %v1056, 32
    %v1062 = vpop.permute.xlu0 %1061
    %v1065 = vadd.f32 %v57, %v1060
    %v1066 = vadd.f32 %v60, %v1062
    %v1067 = vtanh.pop %v1065
    %v1068 = vtanh.pop %v1066
    %v1069 = vsub.f32 1.0, %v1033
    %v1070 = vsub.f32 1.0, %v1048
    %1073 = vrot.lane.b32.xlu0 %v1067, 112
    %v1074 = vpop.permute.xlu0 %1073
    %1075 = vrot.lane.b32.xlu0 %v1068, 112
    %v1076 = vpop.permute.xlu0 %1075
    %v1079 = vmul.f32 %v1069, %v1074
    %v1080 = vmul.f32 %v1070, %v1076
    %v1081 = vrot.slane %v961, 7
    %1082 = vrot.lane.b32.xlu0 %v1081, 16
    %v1083 = vpop.permute.xlu0 %1082
    %1084 = vrot.lane.b32.xlu0 %v961, 16
    %v1085 = vpop.permute.xlu0 %1084
    %v1088 = vmul.f32 %v1033, %v1083
    %v1089 = vmul.f32 %v1048, %v1085
    %v1090 = vadd.f32 %v1079, %v1088
    %v1091 = vadd.f32 %v1080, %v1089
    %v1092 = vrot.slane %v1002, 6
    %v1094 = vadd.f32 %v57, %v1006
    %v1095 = vadd.f32 %v60, %v1092
    %v1096 = vxor.u32 %v1094, 2147483648
    %v1097 = vxor.u32 %v1095, 2147483648
    %v1098 = vmul.f32 %v1096, 1.442695
    %v1099 = vpow.pop %v1098
    %v1100 = vmul.f32 %v1097, 1.442695
    %v1101 = vpow.pop %v1100
    %v1102 = vadd.f32 %v1099, 1.0
    %v1103 = vadd.f32 %v1101, 1.0
    %v1104 = vrcp.pop %v1102
    %v1105 = vmul.f32 %v1102, %v1104
    %v1106 = vsub.f32 1.0, %v1105
    %v1107 = vmul.f32 %v1104, %v1106
    %v1108 = vadd.f32 %v1104, %v1107
    %vm1109 = vweird.f32 %v1102
    %vm1110 = vweird.f32 %v1104
    %vm1111 = vmor %vm1109, %vm1110
    %v1112 = vsel %vm1111, %v1104, %v1108
    %v1113 = vand.u32 2147483647, %v1102
    %vm1114 = vcmp.eq.f32.partialorder %v1113, 8.507059e+37
    %v1115 = vand.u32 %v1102, 2147483648
    %v1116 = vor.u32 1.1754944e-38, %v1115
    %v1117 = vsel %vm1114, %v1116, %v1112
    %v1118 = vmul.f32 1.0, %v1117
    %v1119 = vrcp.pop %v1103
    %v1120 = vmul.f32 %v1103, %v1119
    %v1121 = vsub.f32 1.0, %v1120
    %v1122 = vmul.f32 %v1119, %v1121
    %v1123 = vadd.f32 %v1119, %v1122
    %vm1124 = vweird.f32 %v1103
    %vm1125 = vweird.f32 %v1119
    %vm1126 = vmor %vm1124, %vm1125
    %v1127 = vsel %vm1126, %v1119, %v1123
    %v1128 = vand.u32 2147483647, %v1103
    %vm1129 = vcmp.eq.f32.partialorder %v1128, 8.507059e+37
    %v1130 = vand.u32 %v1103, 2147483648
    %v1131 = vor.u32 1.1754944e-38, %v1130
    %v1132 = vsel %vm1129, %v1131, %v1127
    %v1133 = vmul.f32 1.0, %v1132
    %1134 = vrot.lane.b32.xlu0 %v1092, 96
    %v1135 = vpop.permute.xlu0 %1134
    %v1137 = vmul.f32 %v1118, %v1052
    %v1138 = vmul.f32 %v1133, %v1135
    %1141 = vrot.lane.b32.xlu0 %v1137, 32
    %v1142 = vpop.permute.xlu0 %1141
    %1143 = vrot.lane.b32.xlu0 %v1138, 32
    %v1144 = vpop.permute.xlu0 %1143
    %v1147 = vadd.f32 %v57, %v1142
    %v1148 = vadd.f32 %v60, %v1144
    %v1149 = vtanh.pop %v1147
    %v1150 = vtanh.pop %v1148
    %v1151 = vsub.f32 1.0, %v1118
    %v1152 = vsub.f32 1.0, %v1133
    %1155 = vrot.lane.b32.xlu0 %v1149, 112
    %v1156 = vpop.permute.xlu0 %1155
    %1157 = vrot.lane.b32.xlu0 %v1150, 112
    %v1158 = vpop.permute.xlu0 %1157
    %v1161 = vmul.f32 %v1151, %v1156
    %v1162 = vmul.f32 %v1152, %v1158
    %v1163 = vrot.slane %v961, 1
    %1164 = vrot.lane.b32.xlu0 %v961, 48
    %v1165 = vpop.permute.xlu0 %1164
    %1166 = vrot.lane.b32.xlu0 %v1163, 48
    %v1167 = vpop.permute.xlu0 %1166
    %v1170 = vmul.f32 %v1118, %v1165
    %v1171 = vmul.f32 %v1133, %v1167
    %v1172 = vadd.f32 %v1161, %v1170
    %v1173 = vadd.f32 %v1162, %v1171
    %v1176 = vrot.slane %v1091, 7
    %vm1177 = vcmask 1045509
    %v1178 = vsel %vm1177, %v1176, %v1090
    %1179 = vrot.lane.b32.xlu0 %v1178, 112
    %v1180 = vpop.permute.xlu0 %1179
    %v1184 = vrot.slane %v1172, 7
    %v1185 = vrot.slane %v1173, 6
    %v1186 = vsel %vm1177, %v1185, %v1184
    %1187 = vrot.lane.b32.xlu0 %v1186, 80
    %v1188 = vpop.permute.xlu0 %1187
    %v1190 = vsel %vm32, %v1180, %v1188
    %1191 = vrot.lane.b32.xlu0 %v1090, 112
    %v1192 = vpop.permute.xlu0 %1191
    %1193 = vrot.lane.b32.xlu0 %v1091, 112
    %v1194 = vpop.permute.xlu0 %1193
    %vm1197 = vcmask 126980
    %1198 = vst.msk [vmem:[#allocation2] sm:$0x10] %vm1197, %v1192
    %1199 = vst.msk [vmem:[#allocation2 + $0x8] sm:$0x10] %vm1197, %v1194
    %1200 = vrot.lane.b32.xlu0 %v1172, 80
    %v1201 = vpop.permute.xlu0 %1200
    %1202 = vrot.lane.b32.xlu0 %v1173, 80
    %v1203 = vpop.permute.xlu0 %1202
    %vm1206 = vcmask 257155
    %1207 = vst.msk [vmem:[#allocation2] sm:$0x8] %vm1206, %v1201
    %1208 = vst.msk [vmem:[#allocation2 + $0x8] sm:$0x8] %vm1206, %v1203
    %v1210 = vrot.slane %v1190, 4
    %v1211 = vsel %vm70, %v1210, 0
    %1213 = vmatpush.msra.mxu0 0.0
    %1214 = vmatpush.msra.mxu0 0.0
    %1215 = vmatpush.msra.mxu0 0.0
    %1216 = vmatpush.msra.mxu0 0.0
    %1217 = vmatpush.msra.mxu0 0.0
    %1218 = vmatpush.msra.mxu0 0.0
    %1219 = vmatpush.msra.mxu0 0.0
    %1220 = vmatpush.msra.mxu0 0.0
    %1221 = vmatpush.msra.mxu0 0.0
    %1222 = vmatpush.msra.mxu0 0.0
    %1223 = vmatpush.msra.mxu0 0.0
    %1224 = vmatpush.msra.mxu0 0.0
    %1225 = vmatpush.msra.mxu0 %v65
    %1226 = vmatpush.msra.mxu0 %v64
    %1227 = vmatpush.msra.mxu0 %v63
    %1228 = vmatpush.msra.mxu0 %v62
    %1229 = vmatmul.f32.gmra.mxu0 %v1211
    %v1230 = vpop.f32.mrf.mxu0
    %v1231 = vadd.f32 %v68, %v1230
    %1232 = vdwg.mxu0
    %v1234 = vrot.slane %v1231, 3
    %v1235 = vrot.slane %v1231, 4
    %v1238 = vadd.f32 %v57, %v1234
    %v1239 = vadd.f32 %v60, %v1235
    %v1240 = vxor.u32 %v1238, 2147483648
    %v1241 = vxor.u32 %v1239, 2147483648
    %v1242 = vmul.f32 %v1240, 1.442695
    %v1243 = vpow.pop %v1242
    %v1244 = vmul.f32 %v1241, 1.442695
    %v1245 = vpow.pop %v1244
    %v1246 = vadd.f32 %v1243, 1.0
    %v1247 = vadd.f32 %v1245, 1.0
    %v1248 = vrcp.pop %v1246
    %v1249 = vmul.f32 %v1246, %v1248
    %v1250 = vsub.f32 1.0, %v1249
    %v1251 = vmul.f32 %v1248, %v1250
    %v1252 = vadd.f32 %v1248, %v1251
    %vm1253 = vweird.f32 %v1246
    %vm1254 = vweird.f32 %v1248
    %vm1255 = vmor %vm1253, %vm1254
    %v1256 = vsel %vm1255, %v1248, %v1252
    %v1257 = vand.u32 2147483647, %v1246
    %vm1258 = vcmp.eq.f32.partialorder %v1257, 8.507059e+37
    %v1259 = vand.u32 %v1246, 2147483648
    %v1260 = vor.u32 1.1754944e-38, %v1259
    %v1261 = vsel %vm1258, %v1260, %v1256
    %v1262 = vmul.f32 1.0, %v1261
    %v1263 = vrcp.pop %v1247
    %v1264 = vmul.f32 %v1247, %v1263
    %v1265 = vsub.f32 1.0, %v1264
    %v1266 = vmul.f32 %v1263, %v1265
    %v1267 = vadd.f32 %v1263, %v1266
    %vm1268 = vweird.f32 %v1247
    %vm1269 = vweird.f32 %v1263
    %vm1270 = vmor %vm1268, %vm1269
    %v1271 = vsel %vm1270, %v1263, %v1267
    %v1272 = vand.u32 2147483647, %v1247
    %vm1273 = vcmp.eq.f32.partialorder %v1272, 8.507059e+37
    %v1274 = vand.u32 %v1247, 2147483648
    %v1275 = vor.u32 1.1754944e-38, %v1274
    %v1276 = vsel %vm1273, %v1275, %v1271
    %v1277 = vmul.f32 1.0, %v1276
    %1278 = vrot.lane.b32.xlu0 %v1234, 96
    %v1279 = vpop.permute.xlu0 %1278
    %1280 = vrot.lane.b32.xlu0 %v1235, 96
    %v1281 = vpop.permute.xlu0 %1280
    %v1284 = vmul.f32 %v1262, %v1279
    %v1285 = vmul.f32 %v1277, %v1281
    %1288 = vrot.lane.b32.xlu0 %v1284, 32
    %v1289 = vpop.permute.xlu0 %1288
    %1290 = vrot.lane.b32.xlu0 %v1285, 32
    %v1291 = vpop.permute.xlu0 %1290
    %v1294 = vadd.f32 %v57, %v1289
    %v1295 = vadd.f32 %v60, %v1291
    %v1296 = vtanh.pop %v1294
    %v1297 = vtanh.pop %v1295
    %v1298 = vsub.f32 1.0, %v1262
    %v1299 = vsub.f32 1.0, %v1277
    %1302 = vrot.lane.b32.xlu0 %v1296, 112
    %v1303 = vpop.permute.xlu0 %1302
    %1304 = vrot.lane.b32.xlu0 %v1297, 112
    %v1305 = vpop.permute.xlu0 %1304
    %v1308 = vmul.f32 %v1298, %v1303
    %v1309 = vmul.f32 %v1299, %v1305
    %v1310 = vrot.slane %v1190, 7
    %1311 = vrot.lane.b32.xlu0 %v1310, 16
    %v1312 = vpop.permute.xlu0 %1311
    %1313 = vrot.lane.b32.xlu0 %v1190, 16
    %v1314 = vpop.permute.xlu0 %1313
    %v1317 = vmul.f32 %v1262, %v1312
    %v1318 = vmul.f32 %v1277, %v1314
    %v1319 = vadd.f32 %v1308, %v1317
    %v1320 = vadd.f32 %v1309, %v1318
    %v1321 = vrot.slane %v1231, 6
    %v1322 = vrot.slane %v1231, 7
    %v1325 = vadd.f32 %v57, %v1321
    %v1326 = vadd.f32 %v60, %v1322
    %v1327 = vxor.u32 %v1325, 2147483648
    %v1328 = vxor.u32 %v1326, 2147483648
    %v1329 = vmul.f32 %v1327, 1.442695
    %v1330 = vpow.pop %v1329
    %v1331 = vmul.f32 %v1328, 1.442695
    %v1332 = vpow.pop %v1331
    %v1333 = vadd.f32 %v1330, 1.0
    %v1334 = vadd.f32 %v1332, 1.0
    %v1335 = vrcp.pop %v1333
    %v1336 = vmul.f32 %v1333, %v1335
    %v1337 = vsub.f32 1.0, %v1336
    %v1338 = vmul.f32 %v1335, %v1337
    %v1339 = vadd.f32 %v1335, %v1338
    %vm1340 = vweird.f32 %v1333
    %vm1341 = vweird.f32 %v1335
    %vm1342 = vmor %vm1340, %vm1341
    %v1343 = vsel %vm1342, %v1335, %v1339
    %v1344 = vand.u32 2147483647, %v1333
    %vm1345 = vcmp.eq.f32.partialorder %v1344, 8.507059e+37
    %v1346 = vand.u32 %v1333, 2147483648
    %v1347 = vor.u32 1.1754944e-38, %v1346
    %v1348 = vsel %vm1345, %v1347, %v1343
    %v1349 = vmul.f32 1.0, %v1348
    %v1350 = vrcp.pop %v1334
    %v1351 = vmul.f32 %v1334, %v1350
    %v1352 = vsub.f32 1.0, %v1351
    %v1353 = vmul.f32 %v1350, %v1352
    %v1354 = vadd.f32 %v1350, %v1353
    %vm1355 = vweird.f32 %v1334
    %vm1356 = vweird.f32 %v1350
    %vm1357 = vmor %vm1355, %vm1356
    %v1358 = vsel %vm1357, %v1350, %v1354
    %v1359 = vand.u32 2147483647, %v1334
    %vm1360 = vcmp.eq.f32.partialorder %v1359, 8.507059e+37
    %v1361 = vand.u32 %v1334, 2147483648
    %v1362 = vor.u32 1.1754944e-38, %v1361
    %v1363 = vsel %vm1360, %v1362, %v1358
    %v1364 = vmul.f32 1.0, %v1363
    %1365 = vrot.lane.b32.xlu0 %v1321, 96
    %v1366 = vpop.permute.xlu0 %1365
    %1367 = vrot.lane.b32.xlu0 %v1322, 96
    %v1368 = vpop.permute.xlu0 %1367
    %v1371 = vmul.f32 %v1349, %v1366
    %v1372 = vmul.f32 %v1364, %v1368
    %1375 = vrot.lane.b32.xlu0 %v1371, 32
    %v1376 = vpop.permute.xlu0 %1375
    %1377 = vrot.lane.b32.xlu0 %v1372, 32
    %v1378 = vpop.permute.xlu0 %1377
    %v1381 = vadd.f32 %v57, %v1376
    %v1382 = vadd.f32 %v60, %v1378
    %v1383 = vtanh.pop %v1381
    %v1384 = vtanh.pop %v1382
    %v1385 = vsub.f32 1.0, %v1349
    %v1386 = vsub.f32 1.0, %v1364
    %1389 = vrot.lane.b32.xlu0 %v1383, 112
    %v1390 = vpop.permute.xlu0 %1389
    %1391 = vrot.lane.b32.xlu0 %v1384, 112
    %v1392 = vpop.permute.xlu0 %1391
    %v1395 = vmul.f32 %v1385, %v1390
    %v1396 = vmul.f32 %v1386, %v1392
    %v1397 = vrot.slane %v1190, 2
    %v1398 = vrot.slane %v1190, 3
    %1399 = vrot.lane.b32.xlu0 %v1397, 48
    %v1400 = vpop.permute.xlu0 %1399
    %1401 = vrot.lane.b32.xlu0 %v1398, 48
    %v1402 = vpop.permute.xlu0 %1401
    %v1405 = vmul.f32 %v1349, %v1400
    %v1406 = vmul.f32 %v1364, %v1402
    %v1407 = vadd.f32 %v1395, %v1405
    %v1408 = vadd.f32 %v1396, %v1406
    %v1411 = vrot.slane %v1320, 7
    %vm1412 = vcmask 1046534
    %v1413 = vsel %vm1412, %v1411, %v1319
    %1414 = vrot.lane.b32.xlu0 %v1413, 112
    %v1415 = vpop.permute.xlu0 %1414
    %v1419 = vrot.slane %v1407, 5
    %v1420 = vrot.slane %v1408, 4
    %v1421 = vsel %vm1412, %v1420, %v1419
    %1422 = vrot.lane.b32.xlu0 %v1421, 80
    %v1423 = vpop.permute.xlu0 %1422
    %v1425 = vsel %vm32, %v1415, %v1423
    %1426 = vrot.lane.b32.xlu0 %v1319, 112
    %v1427 = vpop.permute.xlu0 %1426
    %1428 = vrot.lane.b32.xlu0 %v1320, 112
    %v1429 = vpop.permute.xlu0 %1428
    %vm1432 = vcmask 128005
    %1433 = vst.msk [vmem:[#allocation2] sm:$0x20] %vm1432, %v1427
    %1434 = vst.msk [vmem:[#allocation2 + $0x8] sm:$0x20] %vm1432, %v1429
    %1435 = vrot.lane.b32.xlu0 %v1407, 80
    %v1436 = vpop.permute.xlu0 %1435
    %1437 = vrot.lane.b32.xlu0 %v1408, 80
    %v1438 = vpop.permute.xlu0 %1437
    %vm1441 = vcmask 256130
    %1442 = vst.msk [vmem:[#allocation2] sm:$0x4] %vm1441, %v1436
    %1443 = vst.msk [vmem:[#allocation2 + $0x8] sm:$0x4] %vm1441, %v1438
    %v1445 = vrot.slane %v1425, 5
    %v1446 = vsel %vm70, %v1445, 0
    %1448 = vmatpush.msra.mxu0 0.0
    %1449 = vmatpush.msra.mxu0 0.0
    %1450 = vmatpush.msra.mxu0 0.0
    %1451 = vmatpush.msra.mxu0 0.0
    %1452 = vmatpush.msra.mxu0 0.0
    %1453 = vmatpush.msra.mxu0 0.0
    %1454 = vmatpush.msra.mxu0 0.0
    %1455 = vmatpush.msra.mxu0 0.0
    %1456 = vmatpush.msra.mxu0 0.0
    %1457 = vmatpush.msra.mxu0 0.0
    %1458 = vmatpush.msra.mxu0 0.0
    %1459 = vmatpush.msra.mxu0 0.0
    %1460 = vmatpush.msra.mxu0 %v65
    %1461 = vmatpush.msra.mxu0 %v64
    %1462 = vmatpush.msra.mxu0 %v63
    %1463 = vmatpush.msra.mxu0 %v62
    %1464 = vmatmul.f32.gmra.mxu0 %v1446
    %v1465 = vpop.f32.mrf.mxu0
    %v1466 = vadd.f32 %v68, %v1465
    %1467 = vdwg.mxu0
    %v1469 = vrot.slane %v1466, 2
    %v1470 = vrot.slane %v1466, 3
    %v1473 = vadd.f32 %v57, %v1469
    %v1474 = vadd.f32 %v60, %v1470
    %v1475 = vxor.u32 %v1473, 2147483648
    %v1476 = vxor.u32 %v1474, 2147483648
    %v1477 = vmul.f32 %v1475, 1.442695
    %v1478 = vpow.pop %v1477
    %v1479 = vmul.f32 %v1476, 1.442695
    %v1480 = vpow.pop %v1479
    %v1481 = vadd.f32 %v1478, 1.0
    %v1482 = vadd.f32 %v1480, 1.0
    %v1483 = vrcp.pop %v1481
    %v1484 = vmul.f32 %v1481, %v1483
    %v1485 = vsub.f32 1.0, %v1484
    %v1486 = vmul.f32 %v1483, %v1485
    %v1487 = vadd.f32 %v1483, %v1486
    %vm1488 = vweird.f32 %v1481
    %vm1489 = vweird.f32 %v1483
    %vm1490 = vmor %vm1488, %vm1489
    %v1491 = vsel %vm1490, %v1483, %v1487
    %v1492 = vand.u32 2147483647, %v1481
    %vm1493 = vcmp.eq.f32.partialorder %v1492, 8.507059e+37
    %v1494 = vand.u32 %v1481, 2147483648
    %v1495 = vor.u32 1.1754944e-38, %v1494
    %v1496 = vsel %vm1493, %v1495, %v1491
    %v1497 = vmul.f32 1.0, %v1496
    %v1498 = vrcp.pop %v1482
    %v1499 = vmul.f32 %v1482, %v1498
    %v1500 = vsub.f32 1.0, %v1499
    %v1501 = vmul.f32 %v1498, %v1500
    %v1502 = vadd.f32 %v1498, %v1501
    %vm1503 = vweird.f32 %v1482
    %vm1504 = vweird.f32 %v1498
    %vm1505 = vmor %vm1503, %vm1504
    %v1506 = vsel %vm1505, %v1498, %v1502
    %v1507 = vand.u32 2147483647, %v1482
    %vm1508 = vcmp.eq.f32.partialorder %v1507, 8.507059e+37
    %v1509 = vand.u32 %v1482, 2147483648
    %v1510 = vor.u32 1.1754944e-38, %v1509
    %v1511 = vsel %vm1508, %v1510, %v1506
    %v1512 = vmul.f32 1.0, %v1511
    %1513 = vrot.lane.b32.xlu0 %v1469, 96
    %v1514 = vpop.permute.xlu0 %1513
    %1515 = vrot.lane.b32.xlu0 %v1470, 96
    %v1516 = vpop.permute.xlu0 %1515
    %v1519 = vmul.f32 %v1497, %v1514
    %v1520 = vmul.f32 %v1512, %v1516
    %1523 = vrot.lane.b32.xlu0 %v1519, 32
    %v1524 = vpop.permute.xlu0 %1523
    %1525 = vrot.lane.b32.xlu0 %v1520, 32
    %v1526 = vpop.permute.xlu0 %1525
    %v1529 = vadd.f32 %v57, %v1524
    %v1530 = vadd.f32 %v60, %v1526
    %v1531 = vtanh.pop %v1529
    %v1532 = vtanh.pop %v1530
    %v1533 = vsub.f32 1.0, %v1497
    %v1534 = vsub.f32 1.0, %v1512
    %1537 = vrot.lane.b32.xlu0 %v1531, 112
    %v1538 = vpop.permute.xlu0 %1537
    %1539 = vrot.lane.b32.xlu0 %v1532, 112
    %v1540 = vpop.permute.xlu0 %1539
    %v1543 = vmul.f32 %v1533, %v1538
    %v1544 = vmul.f32 %v1534, %v1540
    %v1545 = vrot.slane %v1425, 7
    %1546 = vrot.lane.b32.xlu0 %v1545, 16
    %v1547 = vpop.permute.xlu0 %1546
    %1548 = vrot.lane.b32.xlu0 %v1425, 16
    %v1549 = vpop.permute.xlu0 %1548
    %v1552 = vmul.f32 %v1497, %v1547
    %v1553 = vmul.f32 %v1512, %v1549
    %v1554 = vadd.f32 %v1543, %v1552
    %v1555 = vadd.f32 %v1544, %v1553
    %v1556 = vrot.slane %v1466, 7
    %v1559 = vadd.f32 %v57, %v1556
    %v1560 = vadd.f32 %v60, %v1466
    %v1561 = vxor.u32 %v1559, 2147483648
    %v1562 = vxor.u32 %v1560, 2147483648
    %v1563 = vmul.f32 %v1561, 1.442695
    %v1564 = vpow.pop %v1563
    %v1565 = vmul.f32 %v1562, 1.442695
    %v1566 = vpow.pop %v1565
    %v1567 = vadd.f32 %v1564, 1.0
    %v1568 = vadd.f32 %v1566, 1.0
    %v1569 = vrcp.pop %v1567
    %v1570 = vmul.f32 %v1567, %v1569
    %v1571 = vsub.f32 1.0, %v1570
    %v1572 = vmul.f32 %v1569, %v1571
    %v1573 = vadd.f32 %v1569, %v1572
    %vm1574 = vweird.f32 %v1567
    %vm1575 = vweird.f32 %v1569
    %vm1576 = vmor %vm1574, %vm1575
    %v1577 = vsel %vm1576, %v1569, %v1573
    %v1578 = vand.u32 2147483647, %v1567
    %vm1579 = vcmp.eq.f32.partialorder %v1578, 8.507059e+37
    %v1580 = vand.u32 %v1567, 2147483648
    %v1581 = vor.u32 1.1754944e-38, %v1580
    %v1582 = vsel %vm1579, %v1581, %v1577
    %v1583 = vmul.f32 1.0, %v1582
    %v1584 = vrcp.pop %v1568
    %v1585 = vmul.f32 %v1568, %v1584
    %v1586 = vsub.f32 1.0, %v1585
    %v1587 = vmul.f32 %v1584, %v1586
    %v1588 = vadd.f32 %v1584, %v1587
    %vm1589 = vweird.f32 %v1568
    %vm1590 = vweird.f32 %v1584
    %vm1591 = vmor %vm1589, %vm1590
    %v1592 = vsel %vm1591, %v1584, %v1588
    %v1593 = vand.u32 2147483647, %v1568
    %vm1594 = vcmp.eq.f32.partialorder %v1593, 8.507059e+37
    %v1595 = vand.u32 %v1568, 2147483648
    %v1596 = vor.u32 1.1754944e-38, %v1595
    %v1597 = vsel %vm1594, %v1596, %v1592
    %v1598 = vmul.f32 1.0, %v1597
    %1599 = vrot.lane.b32.xlu0 %v1556, 96
    %v1600 = vpop.permute.xlu0 %1599
    %1601 = vrot.lane.b32.xlu0 %v1466, 96
    %v1602 = vpop.permute.xlu0 %1601
    %v1605 = vmul.f32 %v1583, %v1600
    %v1606 = vmul.f32 %v1598, %v1602
    %1609 = vrot.lane.b32.xlu0 %v1605, 32
    %v1610 = vpop.permute.xlu0 %1609
    %1611 = vrot.lane.b32.xlu0 %v1606, 32
    %v1612 = vpop.permute.xlu0 %1611
    %v1615 = vadd.f32 %v57, %v1610
    %v1616 = vadd.f32 %v60, %v1612
    %v1617 = vtanh.pop %v1615
    %v1618 = vtanh.pop %v1616
    %v1619 = vsub.f32 1.0, %v1583
    %v1620 = vsub.f32 1.0, %v1598
    %1623 = vrot.lane.b32.xlu0 %v1617, 112
    %v1624 = vpop.permute.xlu0 %1623
    %1625 = vrot.lane.b32.xlu0 %v1618, 112
    %v1626 = vpop.permute.xlu0 %1625
    %v1629 = vmul.f32 %v1619, %v1624
    %v1630 = vmul.f32 %v1620, %v1626
    %v1631 = vrot.slane %v1425, 4
    %1632 = vrot.lane.b32.xlu0 %v1631, 48
    %v1633 = vpop.permute.xlu0 %1632
    %1634 = vrot.lane.b32.xlu0 %v1445, 48
    %v1635 = vpop.permute.xlu0 %1634
    %v1638 = vmul.f32 %v1583, %v1633
    %v1639 = vmul.f32 %v1598, %v1635
    %v1640 = vadd.f32 %v1629, %v1638
    %v1641 = vadd.f32 %v1630, %v1639
    %v1644 = vrot.slane %v1555, 7
    %vm1645 = vcmask 1047559
    %v1646 = vsel %vm1645, %v1644, %v1554
    %1647 = vrot.lane.b32.xlu0 %v1646, 112
    %v1648 = vpop.permute.xlu0 %1647
    %v1652 = vrot.slane %v1640, 3
    %v1653 = vrot.slane %v1641, 2
    %v1654 = vsel %vm1645, %v1653, %v1652
    %1655 = vrot.lane.b32.xlu0 %v1654, 80
    %v1656 = vpop.permute.xlu0 %1655
    %v1658 = vsel %vm32, %v1648, %v1656
    %1659 = vrot.lane.b32.xlu0 %v1554, 112
    %v1660 = vpop.permute.xlu0 %1659
    %1661 = vrot.lane.b32.xlu0 %v1555, 112
    %v1662 = vpop.permute.xlu0 %1661
    %vm1665 = vcmask 129030
    %1666 = vst.msk [vmem:[#allocation2] sm:$0x40] %vm1665, %v1660
    %1667 = vst.msk [vmem:[#allocation2 + $0x8] sm:$0x40] %vm1665, %v1662
    %1668 = vrot.lane.b32.xlu0 %v1640, 80
    %v1669 = vpop.permute.xlu0 %1668
    %1670 = vrot.lane.b32.xlu0 %v1641, 80
    %v1671 = vpop.permute.xlu0 %1670
    %vm1674 = vcmask 255105
    %1675 = vst.msk [vmem:[#allocation2] sm:$0x2] %vm1674, %v1669
    %1676 = vst.msk [vmem:[#allocation2 + $0x8] sm:$0x2] %vm1674, %v1671
    %v1678 = vrot.slane %v1658, 6
    %v1679 = vsel %vm70, %v1678, 0
    %1681 = vmatpush.msra.mxu0 0.0
    %1682 = vmatpush.msra.mxu0 0.0
    %1683 = vmatpush.msra.mxu0 0.0
    %1684 = vmatpush.msra.mxu0 0.0
    %1685 = vmatpush.msra.mxu0 0.0
    %1686 = vmatpush.msra.mxu0 0.0
    %1687 = vmatpush.msra.mxu0 0.0
    %1688 = vmatpush.msra.mxu0 0.0
    %1689 = vmatpush.msra.mxu0 0.0
    %1690 = vmatpush.msra.mxu0 0.0
    %1691 = vmatpush.msra.mxu0 0.0
    %1692 = vmatpush.msra.mxu0 0.0
    %1693 = vmatpush.msra.mxu0 %v65
    %1694 = vmatpush.msra.mxu0 %v64
    %1695 = vmatpush.msra.mxu0 %v63
    %1696 = vmatpush.msra.mxu0 %v62
    %1697 = vmatmul.f32.gmra.mxu0 %v1679
    %v1698 = vpop.f32.mrf.mxu0
    %v1699 = vadd.f32 %v68, %v1698
    %1700 = vdwg.mxu0
    %v1702 = vrot.slane %v1699, 1
    %v1703 = vrot.slane %v1699, 2
    %v1706 = vadd.f32 %v57, %v1702
    %v1707 = vadd.f32 %v60, %v1703
    %v1708 = vxor.u32 %v1706, 2147483648
    %v1709 = vxor.u32 %v1707, 2147483648
    %v1710 = vmul.f32 %v1708, 1.442695
    %v1711 = vpow.pop %v1710
    %v1712 = vmul.f32 %v1709, 1.442695
    %v1713 = vpow.pop %v1712
    %v1714 = vadd.f32 %v1711, 1.0
    %v1715 = vadd.f32 %v1713, 1.0
    %v1716 = vrcp.pop %v1714
    %v1717 = vmul.f32 %v1714, %v1716
    %v1718 = vsub.f32 1.0, %v1717
    %v1719 = vmul.f32 %v1716, %v1718
    %v1720 = vadd.f32 %v1716, %v1719
    %vm1721 = vweird.f32 %v1714
    %vm1722 = vweird.f32 %v1716
    %vm1723 = vmor %vm1721, %vm1722
    %v1724 = vsel %vm1723, %v1716, %v1720
    %v1725 = vand.u32 2147483647, %v1714
    %vm1726 = vcmp.eq.f32.partialorder %v1725, 8.507059e+37
    %v1727 = vand.u32 %v1714, 2147483648
    %v1728 = vor.u32 1.1754944e-38, %v1727
    %v1729 = vsel %vm1726, %v1728, %v1724
    %v1730 = vmul.f32 1.0, %v1729
    %v1731 = vrcp.pop %v1715
    %v1732 = vmul.f32 %v1715, %v1731
    %v1733 = vsub.f32 1.0, %v1732
    %v1734 = vmul.f32 %v1731, %v1733
    %v1735 = vadd.f32 %v1731, %v1734
    %vm1736 = vweird.f32 %v1715
    %vm1737 = vweird.f32 %v1731
    %vm1738 = vmor %vm1736, %vm1737
    %v1739 = vsel %vm1738, %v1731, %v1735
    %v1740 = vand.u32 2147483647, %v1715
    %vm1741 = vcmp.eq.f32.partialorder %v1740, 8.507059e+37
    %v1742 = vand.u32 %v1715, 2147483648
    %v1743 = vor.u32 1.1754944e-38, %v1742
    %v1744 = vsel %vm1741, %v1743, %v1739
    %v1745 = vmul.f32 1.0, %v1744
    %1746 = vrot.lane.b32.xlu0 %v1702, 96
    %v1747 = vpop.permute.xlu0 %1746
    %1748 = vrot.lane.b32.xlu0 %v1703, 96
    %v1749 = vpop.permute.xlu0 %1748
    %v1752 = vmul.f32 %v1730, %v1747
    %v1753 = vmul.f32 %v1745, %v1749
    %1756 = vrot.lane.b32.xlu0 %v1752, 32
    %v1757 = vpop.permute.xlu0 %1756
    %1758 = vrot.lane.b32.xlu0 %v1753, 32
    %v1759 = vpop.permute.xlu0 %1758
    %v1762 = vadd.f32 %v57, %v1757
    %v1763 = vadd.f32 %v60, %v1759
    %v1764 = vtanh.pop %v1762
    %v1765 = vtanh.pop %v1763
    %v1766 = vsub.f32 1.0, %v1730
    %v1767 = vsub.f32 1.0, %v1745
    %1770 = vrot.lane.b32.xlu0 %v1764, 112
    %v1771 = vpop.permute.xlu0 %1770
    %1772 = vrot.lane.b32.xlu0 %v1765, 112
    %v1773 = vpop.permute.xlu0 %1772
    %v1776 = vmul.f32 %v1766, %v1771
    %v1777 = vmul.f32 %v1767, %v1773
    %v1778 = vrot.slane %v1658, 7
    %1779 = vrot.lane.b32.xlu0 %v1778, 16
    %v1780 = vpop.permute.xlu0 %1779
    %1781 = vrot.lane.b32.xlu0 %v1658, 16
    %v1782 = vpop.permute.xlu0 %1781
    %v1785 = vmul.f32 %v1730, %v1780
    %v1786 = vmul.f32 %v1745, %v1782
    %v1787 = vadd.f32 %v1776, %v1785
    %v1788 = vadd.f32 %v1777, %v1786
    %v1790 = vadd.f32 %v57, %v1699
    %v1791 = vadd.f32 %v60, %v1702
    %v1792 = vxor.u32 %v1790, 2147483648
    %v1793 = vxor.u32 %v1791, 2147483648
    %v1794 = vmul.f32 %v1792, 1.442695
    %v1795 = vpow.pop %v1794
    %v1796 = vmul.f32 %v1793, 1.442695
    %v1797 = vpow.pop %v1796
    %v1798 = vadd.f32 %v1795, 1.0
    %v1799 = vadd.f32 %v1797, 1.0
    %v1800 = vrcp.pop %v1798
    %v1801 = vmul.f32 %v1798, %v1800
    %v1802 = vsub.f32 1.0, %v1801
    %v1803 = vmul.f32 %v1800, %v1802
    %v1804 = vadd.f32 %v1800, %v1803
    %vm1805 = vweird.f32 %v1798
    %vm1806 = vweird.f32 %v1800
    %vm1807 = vmor %vm1805, %vm1806
    %v1808 = vsel %vm1807, %v1800, %v1804
    %v1809 = vand.u32 2147483647, %v1798
    %vm1810 = vcmp.eq.f32.partialorder %v1809, 8.507059e+37
    %v1811 = vand.u32 %v1798, 2147483648
    %v1812 = vor.u32 1.1754944e-38, %v1811
    %v1813 = vsel %vm1810, %v1812, %v1808
    %v1814 = vmul.f32 1.0, %v1813
    %v1815 = vrcp.pop %v1799
    %v1816 = vmul.f32 %v1799, %v1815
    %v1817 = vsub.f32 1.0, %v1816
    %v1818 = vmul.f32 %v1815, %v1817
    %v1819 = vadd.f32 %v1815, %v1818
    %vm1820 = vweird.f32 %v1799
    %vm1821 = vweird.f32 %v1815
    %vm1822 = vmor %vm1820, %vm1821
    %v1823 = vsel %vm1822, %v1815, %v1819
    %v1824 = vand.u32 2147483647, %v1799
    %vm1825 = vcmp.eq.f32.partialorder %v1824, 8.507059e+37
    %v1826 = vand.u32 %v1799, 2147483648
    %v1827 = vor.u32 1.1754944e-38, %v1826
    %v1828 = vsel %vm1825, %v1827, %v1823
    %v1829 = vmul.f32 1.0, %v1828
    %1830 = vrot.lane.b32.xlu0 %v1699, 96
    %v1831 = vpop.permute.xlu0 %1830
    %v1833 = vmul.f32 %v1814, %v1831
    %v1834 = vmul.f32 %v1829, %v1747
    %1837 = vrot.lane.b32.xlu0 %v1833, 32
    %v1838 = vpop.permute.xlu0 %1837
    %1839 = vrot.lane.b32.xlu0 %v1834, 32
    %v1840 = vpop.permute.xlu0 %1839
    %v1843 = vadd.f32 %v57, %v1838
    %v1844 = vadd.f32 %v60, %v1840
    %v1845 = vtanh.pop %v1843
    %v1846 = vtanh.pop %v1844
    %v1847 = vsub.f32 1.0, %v1814
    %v1848 = vsub.f32 1.0, %v1829
    %1851 = vrot.lane.b32.xlu0 %v1845, 112
    %v1852 = vpop.permute.xlu0 %1851
    %1853 = vrot.lane.b32.xlu0 %v1846, 112
    %v1854 = vpop.permute.xlu0 %1853
    %v1857 = vmul.f32 %v1847, %v1852
    %v1858 = vmul.f32 %v1848, %v1854
    %1859 = vrot.lane.b32.xlu0 %v1678, 48
    %v1860 = vpop.permute.xlu0 %1859
    %1861 = vrot.lane.b32.xlu0 %v1778, 48
    %v1862 = vpop.permute.xlu0 %1861
    %v1865 = vmul.f32 %v1814, %v1860
    %v1866 = vmul.f32 %v1829, %v1862
    %v1867 = vadd.f32 %v1857, %v1865
    %v1868 = vadd.f32 %v1858, %v1866
    %v1871 = vrot.slane %v1788, 7
    %1872 = vrot.lane.b32.xlu0 %v1787, 112
    %v1873 = vpop.permute.xlu0 %1872
    %1874 = vrot.lane.b32.xlu0 %v1871, 112
    %v1875 = vpop.permute.xlu0 %1874
    %v1880 = vrot.slane %v1867, 1
    %1881 = vrot.lane.b32.xlu0 %v1880, 80
    %v1882 = vpop.permute.xlu0 %1881
    %1883 = vrot.lane.b32.xlu0 %v1868, 80
    %v1884 = vpop.permute.xlu0 %1883
    %v1887 = vsel %vm32, %v1873, %v1882
    %v1888 = vsel %vm32, %v1875, %v1884
    %1889 = vrot.lane.b32.xlu0 %v1788, 112
    %v1890 = vpop.permute.xlu0 %1889
    %vm1892 = vcmask 130055
    %1893 = vst.msk [vmem:[#allocation2] sm:$0x80] %vm1892, %v1873
    %1894 = vst.msk [vmem:[#allocation2 + $0x8] sm:$0x80] %vm1892, %v1890
    %1895 = vrot.lane.b32.xlu0 %v1867, 80
    %v1896 = vpop.permute.xlu0 %1895
    %vm1898 = vcmask 254080
    %1899 = vst.msk [vmem:[#allocation2] sm:$0x1] %vm1898, %v1896
    %1900 = vst.msk [vmem:[#allocation2 + $0x8] sm:$0x1] %vm1898, %v1884
    %vm1901 = vcmask 261127
    %1902 = vst.msk [vmem:[#allocation4 - $0x7] sm:$0x80] %vm1901, %v1887
    %vm1903 = vcmask 253952
    %1904 = vst.msk [vmem:[#allocation4 + $0x1] sm:$0x1] %vm1903, %v1888
    // Predicated region
    $region22: #{gru_encoder_forward.1} parent=1 // pred_check
      _
    $region23: #{gru_encoder_forward.1} parent=1 // pred_check_branch
      %1906 = sbr.rel (0) target = $region25
    $region24: #{gru_encoder_forward.1} parent=1 // pred_region
      %1908 = vsyncadd [#allocation3], 0
      %s1909 = sshll.u32 [#allocation2], 4
      %s1910 = int_to_ptr.vmem [resolvable:$true] %s1909
      %s1911 = sshll.u32 %s5, 4
      %s1912 = int_to_ptr.hbm [resolvable:$true] %s1911
      %1917 = dma.vmem_to_hbm [thread:$0]  %s1910, 256, %s1912, [#allocation3], 128, 128, 8
    $region25: #{gru_encoder_forward.1} parent=1 // pred_fallthru
      _
    // Predicated region
    $region26: #{gru_encoder_forward.1} parent=1 // pred_check
      _
    $region27: #{gru_encoder_forward.1} parent=1 // pred_check_branch
      %1919 = sbr.rel (0) target = $region29
    $region28: #{gru_encoder_forward.1} parent=1 // pred_region
      %1921 = vsyncadd [#allocation5], 0
      %s1923 = sshll.u32 [#allocation4], 4
      %s1924 = int_to_ptr.vmem [resolvable:$true] %s1923
      %s1925 = sshll.u32 %s6, 4
      %s1926 = int_to_ptr.hbm [resolvable:$true] %s1925
      %1928 = dma.vmem_to_hbm [thread:$0]  %s1924, 32, %s1926, [#allocation5]
    $region29: #{gru_encoder_forward.1} parent=1 // pred_fallthru
      _
    // Predicated region
    $region30: #{gru_encoder_forward.1} parent=1 // pred_check
      _
    $region31: #{gru_encoder_forward.1} parent=1 // pred_check_branch
      %1930 = sbr.rel (0) target = $region33
    $region32: #{gru_encoder_forward.1} parent=1 // pred_region
      %1932 = dma.done [#allocation3], 256
    $region33: #{gru_encoder_forward.1} parent=1 // pred_fallthru
      _
    // Predicated region
    $region34: #{gru_encoder_forward.1} parent=1 // pred_check
      _
    $region35: #{gru_encoder_forward.1} parent=1 // pred_check_branch
      %1934 = sbr.rel (0) target = $region37
    $region36: #{gru_encoder_forward.1} parent=1 // pred_region
      %1936 = dma.done [#allocation5], 32
    $region37: #{gru_encoder_forward.1} parent=1 // pred_fallthru
      _
    %1937 = vsyncpa [#allocation3], 1
    %1938 = vsyncpa [#allocation5], 1

</llo_original>
